<compile_context>
chip_gen: v7x
topology: tpu7x:2x2x1
jax: 0.10.0
libtpu: 0.0.40
codegen_flags: <defaults>
</compile_context>

<pallas_src>
import functools

import jax
import jax.numpy as jnp
from jax.experimental import pallas as pl
from jax.experimental.pallas import tpu as pltpu


# ---------------------------------------------------------------------------
# Fused kernel: single-K 3x3 conv + bias + ReLU + MXU mean-pool + head
# ---------------------------------------------------------------------------
def _fused_conv_pool_head_kernel(
    x_ref,        # (1, 1, MP_PAD, Cin)        bf16  haloed, width-padded flat row tile
    w9_ref,       # (9*Cin, Ctot_pad)          bf16  fused conv weights, taps stacked on K
    bc_ref,       # (1, Ctot_pad)              f32   fused conv bias
    mask_ref,     # (1, ROWS_OUT)              f32   valid-column mask, pre-scaled 1/(H*W)
    wh_ref,       # (Ctot_pad, num_classes)    f32   head weight (zero rows on pad chans)
    bh_ref,       # (1, num_classes)           f32   head bias
    o_ref,        # (1, 1, num_classes)        f32   logits for this batch element
    pooled_ref,   # (1, Ctot_pad) f32 VMEM scratch: running mean-pooled features
    *, n_row_tiles, rows_out, wp):
    t = pl.program_id(1)

    @pl.when(t == 0)
    def _init():
        pooled_ref[...] = jnp.zeros_like(pooled_ref)

    # Build the (rows_out, 9*Cin) im2col LHS from 9 statically shifted slices
    # of the flattened (row-major over padded width Wp) tile, then run ONE
    # K = 9*Cin matmul. The lane-dim concat is done in f32 (widest Mosaic
    # support for unaligned lane offsets) and cast back to bf16 for the MXU;
    # the casts touch a few KB of VPU work and hide under the matmul.
    taps = [
        x_ref[0, 0, dh * wp + dw: dh * wp + dw + rows_out, :].astype(jnp.float32)
        for dh in range(3) for dw in range(3)
    ]
    lhs = jnp.concatenate(taps, axis=-1).astype(jnp.bfloat16)    # (rows_out, 9*Cin)
    acc = jnp.dot(lhs, w9_ref[...], preferred_element_type=jnp.float32)
    feat = jnp.maximum(acc + bc_ref[...], 0.0)                   # (rows_out, Ctot_pad)

    # Masked global-mean pooling as a tiny MXU dot; flat rows that straddle the
    # width padding ((j % Wp) >= W) carry mask 0, valid rows carry 1/(H*W), so
    # this accumulates the global mean directly across row tiles.
    pooled_ref[...] += jnp.dot(mask_ref[...], feat,
                               preferred_element_type=jnp.float32)

    @pl.when(t == n_row_tiles - 1)
    def _finalize():
        # TODO(synk): head dropout is identity at inference; no op emitted.
        o_ref[0] = (jnp.dot(pooled_ref[...], wh_ref[...],
                            preferred_element_type=jnp.float32) + bh_ref[...])


# ---------------------------------------------------------------------------
# Wrapper
# ---------------------------------------------------------------------------
def _largest_divisor_le(n, cap):
    for t in range(min(n, cap), 0, -1):
        if n % t == 0:
            return t
    return 1


def classification_forward(x_nchw, params, row_tile=None):
    """Mirrors Classification.forward: per-extractor feature volumes concatenated
    on the channel dim, then head (global average pool + dropout + linear)."""
    n, cin, h, w = x_nchw.shape
    # Whole image per grid step by default: per-step overhead (~0.35us) would
    # dominate tiny row tiles, bigger tiles fill the MXU M dim, and a single
    # tile per image removes halo duplication from the wrapper-side prep.
    th = h if row_tile is None else _largest_divisor_le(h, row_tile)
    ht = h // th                               # row tiles per image (inner grid axis)
    wp = w + 2                                 # padded width
    rows_out = th * wp                         # flat rows per tile (incl. 2 pad cols/row)
    mp = (th + 2) * wp                         # flat rows of the haloed input tile
    mp_pad = ((mp + 2 + 7) // 8) * 8           # room for the (2,2)-tap slice overrun

    # ---- fuse all extractor weights: concat along Cout (== torch.cat(dim=1)),
    #      then zero-pad Ctot to a lane-dense multiple of 128 (free on HW). ----
    w_all = jnp.concatenate(
        [jnp.transpose(wc, (2, 3, 1, 0)) for (wc, _) in params["extractors"]],
        axis=-1)                                             # (3, 3, Cin, Ctot)
    ctot = w_all.shape[-1]
    ctot_pad = ((ctot + 127) // 128) * 128
    pad_c = ctot_pad - ctot
    w9 = jnp.pad(w_all, ((0, 0), (0, 0), (0, 0), (0, pad_c))) \
            .reshape(9 * cin, ctot_pad).astype(jnp.bfloat16)  # taps stacked on K
    b_conv = jnp.concatenate([bc for (_, bc) in params["extractors"]], axis=0)
    b_conv = jnp.pad(b_conv, (0, pad_c)).reshape(1, ctot_pad).astype(jnp.float32)
    w_head = jnp.pad(params["head_w"].astype(jnp.float32), ((0, pad_c), (0, 0)))
    num_classes = w_head.shape[1]
    b_head = params["head_b"].reshape(1, num_classes).astype(jnp.float32)

    # ---- haloed, width-padded, flattened row tiles (bf16, single prep pass) ----
    x_nhwc = jnp.transpose(x_nchw, (0, 2, 3, 1)).astype(jnp.bfloat16)
    xp = jnp.pad(x_nhwc, ((0, 0), (1, 1), (1, 1), (0, 0)))    # (N, H+2, Wp, Cin)
    if ht == 1:
        x_tiles = xp.reshape(n, 1, mp, cin)
    else:
        # TODO(synk): for large H (ht > 1) this duplicates halo rows in HBM;
        # switch to memory_space=pl.ANY + in-kernel make_async_copy of the
        # haloed (th+2)-row window to avoid the extra traffic.
        x_tiles = jnp.stack([xp[:, t * th: t * th + th + 2] for t in range(ht)],
                            axis=1).reshape(n, ht, mp, cin)
    x_tiles = jnp.pad(x_tiles, ((0, 0), (0, 0), (0, mp_pad - mp), (0, 0)))

    # valid-column mask as a lane-dense row vector, pre-scaled by 1/(H*W) so
    # the in-kernel pooling dot accumulates the global mean directly.
    col = jnp.arange(rows_out, dtype=jnp.int32) % wp
    mask = ((col < w).astype(jnp.float32) / float(h * w)).reshape(1, rows_out)

    kernel = functools.partial(
        _fused_conv_pool_head_kernel,
        n_row_tiles=ht, rows_out=rows_out, wp=wp)

    flops = int(2 * n * ht * rows_out * (9 * cin) * ctot_pad      # conv matmul
                + 2 * n * ht * rows_out * ctot_pad                # pooling dot
                + 2 * n * ctot_pad * num_classes)                 # head
    bytes_accessed = int(x_tiles.size * 2 + w9.size * 2
                         + (b_conv.size + mask.size + w_head.size + b_head.size) * 4
                         + n * num_classes * 4)

    out = pl.pallas_call(
        kernel,
        out_shape=jax.ShapeDtypeStruct((n, 1, num_classes), jnp.float32),
        grid=(n, ht),
        in_specs=[
            pl.BlockSpec((1, 1, mp_pad, cin), lambda i, t: (i, t, 0, 0)),
            # Grid-invariant operands (constant index maps).
            # TODO(synk): at production Cin/Ctot sizes, cap these to single
            # buffering (pipeline_mode=pl.Buffered(1)) to stay well under
            # v7x's 64 MiB VMEM.
            pl.BlockSpec((9 * cin, ctot_pad), lambda i, t: (0, 0)),
            pl.BlockSpec((1, ctot_pad), lambda i, t: (0, 0)),
            pl.BlockSpec((1, rows_out), lambda i, t: (0, 0)),
            pl.BlockSpec((ctot_pad, num_classes), lambda i, t: (0, 0)),
            pl.BlockSpec((1, num_classes), lambda i, t: (0, 0)),
        ],
        out_specs=pl.BlockSpec((1, 1, num_classes), lambda i, t: (i, 0, 0)),
        scratch_shapes=[pltpu.VMEM((1, ctot_pad), jnp.float32)],
        compiler_params=pltpu.CompilerParams(
            # t carries the pooled accumulator -> must stay "arbitrary".
            # TODO(synk): on v7x with tiny batch, split the row-tile reduction
            # (or Ctot) across the 2 TensorCores for better utilization.
            dimension_semantics=("parallel", "arbitrary"),
            vmem_limit_bytes=32 * 1024 * 1024),
        cost_estimate=pl.CostEstimate(flops=flops, transcendentals=0,
                                      bytes_accessed=bytes_accessed),
    )(x_tiles, w9, b_conv, mask, w_head, b_head)
    return out.reshape(n, num_classes)


# ---------------------------------------------------------------------------
# Plain-JAX reference (f32) for a correctness sanity check
# ---------------------------------------------------------------------------
def _reference_forward(x_nchw, params):
    x = jnp.transpose(x_nchw, (0, 2, 3, 1)).astype(jnp.float32)
    feats = []
    for (wc, bc) in params["extractors"]:
        w_hwio = jnp.transpose(wc, (2, 3, 1, 0))
        y = jax.lax.conv_general_dilated(
            x, w_hwio, window_strides=(1, 1), padding="SAME",
            dimension_numbers=("NHWC", "HWIO", "NHWC"))
        feats.append(jnp.maximum(y + bc, 0.0))
    f = jnp.concatenate(feats, axis=-1)
    pooled = jnp.mean(f, axis=(1, 2))
    return pooled @ params["head_w"] + params["head_b"]


# ---------------------------------------------------------------------------
# Deterministic parameter construction (synthetic, no checkpoint loading)
# ---------------------------------------------------------------------------
def make_params(key, num_extractors, cin, cout, num_classes):
    params = {"extractors": []}
    keys = jax.random.split(key, 2 * num_extractors + 2)
    for i in range(num_extractors):
        wc = 0.1 * jax.random.normal(keys[2 * i], (cout, cin, 3, 3), jnp.float32)
        bc = 0.1 * jax.random.normal(keys[2 * i + 1], (cout,), jnp.float32)
        params["extractors"].append((wc, bc))
    ctot = num_extractors * cout
    params["head_w"] = 0.1 * jax.random.normal(keys[-2], (ctot, num_classes),
                                               jnp.float32)
    params["head_b"] = 0.1 * jax.random.normal(keys[-1], (num_classes,),
                                               jnp.float32)
    return params


if __name__ == "__main__":
    key = jax.random.PRNGKey(0)
    k_x, k_p = jax.random.split(key)

    N, C, H, W = 2, 4, 16, 16          # PyTorch NCHW input shape
    NUM_EXTRACTORS = 2
    COUT = 8
    NUM_CLASSES = 1                    # binary contrail classification

    x = jax.random.normal(k_x, (N, C, H, W), jnp.float32)
    params = make_params(k_p, NUM_EXTRACTORS, C, COUT, NUM_CLASSES)

    fwd = jax.jit(classification_forward, static_argnames=("row_tile",))
    logits = fwd(x, params)            # default: whole image per grid step
    jax.block_until_ready(logits)
    assert logits.shape == (N, NUM_CLASSES)

    ref = _reference_forward(x, params)
    err = float(jnp.max(jnp.abs(logits - ref)))
    assert err < 5e-2, f"mismatch vs reference: max abs err {err}"
    print("KERNEL_OK")
</pallas_src>

<mosaic_0001>
module attributes {stable_mosaic.version = 11 : i64} {
  func.func @_fused_conv_pool_head_kernel(%arg0: i32, %arg1: i32, %arg2: memref<1x1x328x4xbf16, #tpu.memory_space<vmem>>, %arg3: memref<36x128xbf16, #tpu.memory_space<vmem>>, %arg4: memref<1x128xf32, #tpu.memory_space<vmem>>, %arg5: memref<1x288xf32, #tpu.memory_space<vmem>>, %arg6: memref<128x1xf32, #tpu.memory_space<vmem>>, %arg7: memref<1x1xf32, #tpu.memory_space<vmem>>, %arg8: memref<1x1x1xf32, #tpu.memory_space<vmem>>, %arg9: memref<1x128xf32, #tpu.memory_space<vmem>>) attributes {dimension_semantics = [#tpu.dimension_semantics<parallel>, #tpu.dimension_semantics<arbitrary>], iteration_bounds = array<i64: 2, 1>, scalar_prefetch = 0 : i64, scratch_operands = 1 : i64, tpu.core_type = #tpu.core_type<tc>, window_params = [{transform_indices = @transform_0, window_bounds = array<i64: 1, 1, 328, 4>}, {pipeline_mode = #tpu.pipeline_mode<synchronous>, transform_indices = @transform_1, window_bounds = array<i64: 36, 128>}, {pipeline_mode = #tpu.pipeline_mode<synchronous>, transform_indices = @transform_2, window_bounds = array<i64: 1, 128>}, {pipeline_mode = #tpu.pipeline_mode<synchronous>, transform_indices = @transform_3, window_bounds = array<i64: 1, 288>}, {pipeline_mode = #tpu.pipeline_mode<synchronous>, transform_indices = @transform_4, window_bounds = array<i64: 128, 1>}, {pipeline_mode = #tpu.pipeline_mode<synchronous>, transform_indices = @transform_5, window_bounds = array<i64: 1, 1>}, {transform_indices = @transform_6, window_bounds = array<i64: 1, 1, 1>}]} {
    %c0_i32 = arith.constant 0 : i32
    %0 = arith.cmpi eq, %arg1, %c0_i32 : i32
    %1 = arith.extui %0 : i1 to i32
    %c0_i32_0 = arith.constant 0 : i32
    %2 = arith.cmpi ne, %1, %c0_i32_0 : i32
    scf.if %2 {
      %cst_42 = arith.constant 0.000000e+00 : f32
      %47 = vector.broadcast %cst_42 : f32 to vector<1x128xf32>
      %c0_43 = arith.constant 0 : index
      %c0_44 = arith.constant 0 : index
      %48 = vector.load %arg9[%c0_43, %c0_44] : memref<1x128xf32, #tpu.memory_space<vmem>>, vector<1x128xf32>
      tpu.vector_store %arg9[%c0_43, %c0_44], %47 {strides = array<i32>} : memref<1x128xf32, #tpu.memory_space<vmem>>, vector<1x128xf32>,
    } else {
    }
    %c0 = arith.constant 0 : index
    %c0_1 = arith.constant 0 : index
    %c0_2 = arith.constant 0 : index
    %c0_3 = arith.constant 0 : index
    %3 = vector.load %arg2[%c0, %c0_1, %c0_2, %c0_3] : memref<1x1x328x4xbf16, #tpu.memory_space<vmem>>, vector<1x1x288x4xbf16>
    %4 = vector.shape_cast %3 : vector<1x1x288x4xbf16> to vector<288x4xbf16>
    %5 = arith.extf %4 : vector<288x4xbf16> to vector<288x4xf32>
    %c0_4 = arith.constant 0 : index
    %c0_5 = arith.constant 0 : index
    %c1 = arith.constant 1 : index
    %c0_6 = arith.constant 0 : index
    %6 = vector.load %arg2[%c0_4, %c0_5, %c1, %c0_6] : memref<1x1x328x4xbf16, #tpu.memory_space<vmem>>, vector<1x1x288x4xbf16>
    %7 = vector.shape_cast %6 : vector<1x1x288x4xbf16> to vector<288x4xbf16>
    %8 = arith.extf %7 : vector<288x4xbf16> to vector<288x4xf32>
    %c0_7 = arith.constant 0 : index
    %c0_8 = arith.constant 0 : index
    %c2 = arith.constant 2 : index
    %c0_9 = arith.constant 0 : index
    %9 = vector.load %arg2[%c0_7, %c0_8, %c2, %c0_9] : memref<1x1x328x4xbf16, #tpu.memory_space<vmem>>, vector<1x1x288x4xbf16>
    %10 = vector.shape_cast %9 : vector<1x1x288x4xbf16> to vector<288x4xbf16>
    %11 = arith.extf %10 : vector<288x4xbf16> to vector<288x4xf32>
    %c0_10 = arith.constant 0 : index
    %c0_11 = arith.constant 0 : index
    %c18 = arith.constant 18 : index
    %c0_12 = arith.constant 0 : index
    %12 = vector.load %arg2[%c0_10, %c0_11, %c18, %c0_12] : memref<1x1x328x4xbf16, #tpu.memory_space<vmem>>, vector<1x1x288x4xbf16>
    %13 = vector.shape_cast %12 : vector<1x1x288x4xbf16> to vector<288x4xbf16>
    %14 = arith.extf %13 : vector<288x4xbf16> to vector<288x4xf32>
    %c0_13 = arith.constant 0 : index
    %c0_14 = arith.constant 0 : index
    %c19 = arith.constant 19 : index
    %c0_15 = arith.constant 0 : index
    %15 = vector.load %arg2[%c0_13, %c0_14, %c19, %c0_15] : memref<1x1x328x4xbf16, #tpu.memory_space<vmem>>, vector<1x1x288x4xbf16>
    %16 = vector.shape_cast %15 : vector<1x1x288x4xbf16> to vector<288x4xbf16>
    %17 = arith.extf %16 : vector<288x4xbf16> to vector<288x4xf32>
    %c0_16 = arith.constant 0 : index
    %c0_17 = arith.constant 0 : index
    %c20 = arith.constant 20 : index
    %c0_18 = arith.constant 0 : index
    %18 = vector.load %arg2[%c0_16, %c0_17, %c20, %c0_18] : memref<1x1x328x4xbf16, #tpu.memory_space<vmem>>, vector<1x1x288x4xbf16>
    %19 = vector.shape_cast %18 : vector<1x1x288x4xbf16> to vector<288x4xbf16>
    %20 = arith.extf %19 : vector<288x4xbf16> to vector<288x4xf32>
    %c0_19 = arith.constant 0 : index
    %c0_20 = arith.constant 0 : index
    %c36 = arith.constant 36 : index
    %c0_21 = arith.constant 0 : index
    %21 = vector.load %arg2[%c0_19, %c0_20, %c36, %c0_21] : memref<1x1x328x4xbf16, #tpu.memory_space<vmem>>, vector<1x1x288x4xbf16>
    %22 = vector.shape_cast %21 : vector<1x1x288x4xbf16> to vector<288x4xbf16>
    %23 = arith.extf %22 : vector<288x4xbf16> to vector<288x4xf32>
    %c0_22 = arith.constant 0 : index
    %c0_23 = arith.constant 0 : index
    %c37 = arith.constant 37 : index
    %c0_24 = arith.constant 0 : index
    %24 = vector.load %arg2[%c0_22, %c0_23, %c37, %c0_24] : memref<1x1x328x4xbf16, #tpu.memory_space<vmem>>, vector<1x1x288x4xbf16>
    %25 = vector.shape_cast %24 : vector<1x1x288x4xbf16> to vector<288x4xbf16>
    %26 = arith.extf %25 : vector<288x4xbf16> to vector<288x4xf32>
    %c0_25 = arith.constant 0 : index
    %c0_26 = arith.constant 0 : index
    %c38 = arith.constant 38 : index
    %c0_27 = arith.constant 0 : index
    %27 = vector.load %arg2[%c0_25, %c0_26, %c38, %c0_27] : memref<1x1x328x4xbf16, #tpu.memory_space<vmem>>, vector<1x1x288x4xbf16>
    %28 = vector.shape_cast %27 : vector<1x1x288x4xbf16> to vector<288x4xbf16>
    %29 = arith.extf %28 : vector<288x4xbf16> to vector<288x4xf32>
    %30 = tpu.concatenate %5, %8, %11, %14, %17, %20, %23, %26, %29 in 1 : vector<288x4xf32>, vector<288x4xf32>, vector<288x4xf32>, vector<288x4xf32>, vector<288x4xf32>, vector<288x4xf32>, vector<288x4xf32>, vector<288x4xf32>, vector<288x4xf32> -> vector<288x36xf32>
    %31 = arith.truncf %30 : vector<288x36xf32> to vector<288x36xbf16>
    %c0_28 = arith.constant 0 : index
    %c0_29 = arith.constant 0 : index
    %32 = vector.load %arg3[%c0_28, %c0_29] : memref<36x128xbf16, #tpu.memory_space<vmem>>, vector<36x128xbf16>
    %cst = arith.constant dense<0.000000e+00> : vector<288x128xf32>
    %33 = tpu.matmul %31, %32, %cst {dimension_numbers = #tpu.dot_dimension_numbers<[1], [0], [0], [1], [0, 0, 1, 1], [], []>} : vector<288x36xbf16>, vector<36x128xbf16>, vector<288x128xf32> -> vector<288x128xf32>
    %c0_30 = arith.constant 0 : index
    %c0_31 = arith.constant 0 : index
    %34 = vector.load %arg4[%c0_30, %c0_31] : memref<1x128xf32, #tpu.memory_space<vmem>>, vector<1x128xf32>
    %35 = vector.broadcast %34 : vector<1x128xf32> to vector<288x128xf32>
    %36 = arith.addf %33, %35 : vector<288x128xf32>
    %cst_32 = arith.constant 0.000000e+00 : f32
    %37 = vector.broadcast %cst_32 : f32 to vector<288x128xf32>
    %38 = arith.maximumf %36, %37 : vector<288x128xf32>
    %c0_33 = arith.constant 0 : index
    %c0_34 = arith.constant 0 : index
    %39 = vector.load %arg9[%c0_33, %c0_34] : memref<1x128xf32, #tpu.memory_space<vmem>>, vector<1x128xf32>
    %c0_35 = arith.constant 0 : index
    %c0_36 = arith.constant 0 : index
    %40 = vector.load %arg5[%c0_35, %c0_36] : memref<1x288xf32, #tpu.memory_space<vmem>>, vector<1x288xf32>
    %cst_37 = arith.constant dense<0.000000e+00> : vector<1x128xf32>
    %41 = tpu.matmul %40, %38, %cst_37 {dimension_numbers = #tpu.dot_dimension_numbers<[1], [0], [0], [1], [0, 0, 1, 1], [], []>} : vector<1x288xf32>, vector<288x128xf32>, vector<1x128xf32> -> vector<1x128xf32>
    %42 = arith.addf %39, %41 : vector<1x128xf32>
    %c0_38 = arith.constant 0 : index
    %c0_39 = arith.constant 0 : index
    %43 = vector.load %arg9[%c0_38, %c0_39] : memref<1x128xf32, #tpu.memory_space<vmem>>, vector<1x128xf32>
    tpu.vector_store %arg9[%c0_38, %c0_39], %42 {strides = array<i32>} : memref<1x128xf32, #tpu.memory_space<vmem>>, vector<1x128xf32>,
    %c0_i32_40 = arith.constant 0 : i32
    %44 = arith.cmpi eq, %arg1, %c0_i32_40 : i32
    %45 = arith.extui %44 : i1 to i32
    %c0_i32_41 = arith.constant 0 : i32
    %46 = arith.cmpi ne, %45, %c0_i32_41 : i32
    scf.if %46 {
      %c0_42 = arith.constant 0 : index
      %c0_43 = arith.constant 0 : index
      %47 = vector.load %arg9[%c0_42, %c0_43] : memref<1x128xf32, #tpu.memory_space<vmem>>, vector<1x128xf32>
      %c0_44 = arith.constant 0 : index
      %c0_45 = arith.constant 0 : index
      %48 = vector.load %arg6[%c0_44, %c0_45] : memref<128x1xf32, #tpu.memory_space<vmem>>, vector<128x1xf32>
      %cst_46 = arith.constant dense<0.000000e+00> : vector<1x1xf32>
      %49 = tpu.matmul %47, %48, %cst_46 {dimension_numbers = #tpu.dot_dimension_numbers<[1], [0], [0], [1], [0, 0, 1, 1], [], []>} : vector<1x128xf32>, vector<128x1xf32>, vector<1x1xf32> -> vector<1x1xf32>
      %c0_47 = arith.constant 0 : index
      %c0_48 = arith.constant 0 : index
      %50 = vector.load %arg7[%c0_47, %c0_48] : memref<1x1xf32, #tpu.memory_space<vmem>>, vector<1x1xf32>
      %51 = arith.addf %49, %50 : vector<1x1xf32>
      %c0_49 = arith.constant 0 : index
      %c0_50 = arith.constant 0 : index
      %c0_51 = arith.constant 0 : index
      %52 = vector.load %arg8[%c0_49, %c0_50, %c0_51] : memref<1x1x1xf32, #tpu.memory_space<vmem>>, vector<1x1x1xf32>
      %53 = vector.shape_cast %52 : vector<1x1x1xf32> to vector<1x1xf32>
      %54 = vector.shape_cast %51 : vector<1x1xf32> to vector<1x1x1xf32>
      tpu.vector_store %arg8[%c0_49, %c0_50, %c0_51], %54 {strides = array<i32>} : memref<1x1x1xf32, #tpu.memory_space<vmem>>, vector<1x1x1xf32>,
    } else {
    }
    return
  }
  func.func @transform_0(%arg0: i32, %arg1: i32) -> (i32, i32, i32, i32) {
    %c0_i32 = arith.constant 0 : i32
    %c0_i32_0 = arith.constant 0 : i32
    %c0_i32_1 = arith.constant 0 : i32
    return %arg0, %arg1, %c0_i32, %c0_i32_0 : i32, i32, i32, i32
  }
  func.func @transform_1(%arg0: i32, %arg1: i32) -> (i32, i32) {
    %c0_i32 = arith.constant 0 : i32
    %c0_i32_0 = arith.constant 0 : i32
    %c0_i32_1 = arith.constant 0 : i32
    return %c0_i32, %c0_i32_0 : i32, i32
  }
  func.func @transform_2(%arg0: i32, %arg1: i32) -> (i32, i32) {
    %c0_i32 = arith.constant 0 : i32
    %c0_i32_0 = arith.constant 0 : i32
    %c0_i32_1 = arith.constant 0 : i32
    return %c0_i32, %c0_i32_0 : i32, i32
  }
  func.func @transform_3(%arg0: i32, %arg1: i32) -> (i32, i32) {
    %c0_i32 = arith.constant 0 : i32
    %c0_i32_0 = arith.constant 0 : i32
    %c0_i32_1 = arith.constant 0 : i32
    return %c0_i32, %c0_i32_0 : i32, i32
  }
  func.func @transform_4(%arg0: i32, %arg1: i32) -> (i32, i32) {
    %c0_i32 = arith.constant 0 : i32
    %c0_i32_0 = arith.constant 0 : i32
    %c0_i32_1 = arith.constant 0 : i32
    return %c0_i32, %c0_i32_0 : i32, i32
  }
  func.func @transform_5(%arg0: i32, %arg1: i32) -> (i32, i32) {
    %c0_i32 = arith.constant 0 : i32
    %c0_i32_0 = arith.constant 0 : i32
    %c0_i32_1 = arith.constant 0 : i32
    return %c0_i32, %c0_i32_0 : i32, i32
  }
  func.func @transform_6(%arg0: i32, %arg1: i32) -> (i32, i32, i32) {
    %c0_i32 = arith.constant 0 : i32
    %c0_i32_0 = arith.constant 0 : i32
    %c0_i32_1 = arith.constant 0 : i32
    return %arg0, %c0_i32, %c0_i32_0 : i32, i32, i32
  }
}

</mosaic_0001>

<llo_original>
// kernel: classification_forward.1
$region0: #{classification_forward.1}
  #allocation0 [shape = 'u32[]', space=smem, size = 0x4, offset = 0x4, fixed_abs, tag = 'smem constant byte address 0x4 - core index']
  #allocation1 [shape = 'u32[144,128]{1,0:T(1,128)}', space=vmem, size = 0x12000, scoped, tag = 'internal scratch']
  #allocation2 [shape = 'f32[1,128]{1,0:T(1,128)}', space=vmem, size = 0x200, scoped, tag = 'scratch operand']
  #allocation3 [shape = 'f32[1,1]{1,0:T(1,128)S(1)}', space=vmem, size = 0x200, scoped, tag = 'scoped memory for classification_forward.1']
  %s0 = inlined_call_operand.vmem [shape: bf16[2,1,328,4], index: 0, kind: input, shape index: {}]
  %s1 = inlined_call_operand.vmem [shape: bf16[36,128], index: 1, kind: input, shape index: {}]
  %s2 = inlined_call_operand.vmem [shape: f32[1,128], index: 2, kind: input, shape index: {}]
  %s3 = inlined_call_operand.vmem [shape: f32[1,288], index: 3, kind: input, shape index: {}]
  %s4 = inlined_call_operand.vmem [shape: f32[128,1], index: 4, kind: input, shape index: {}]
  %s5 = inlined_call_operand.<no memory space> [shape: f32[1,1], index: 5, kind: input, shape index: {}]
  %s6 = inlined_call_operand.vmem [shape: f32[2,1,1], index: 6, kind: output, shape index: {}]
  %s7 = sld [smem:[#allocation0]]
  $region65: #{classification_forward.1} parent=0
    _
  %s9 = ssub.s32 1, %s7
  %s10 = scalar_select 0, %s9, %s7
  %v11 = vstv %s5
  %12 = vst [vmem:[#allocation3] sm:$0x1] %v11
  loop: start=0, step=1, limit=4
  $region2: #{classification_forward.1} parent=0 // loop_pre_header
    _
  $region3: #{classification_forward.1} parent=0 // loop_header
    %s14 = sphi 0, %s18
    %p15 = scmp.ge.s32.totalorder %s14, 4
    %s21 = sphi 0, %s33
    %s22 = sphi 0, %s29
    %s23 = sphi 0, %s21
    %s24 = sphi 0, %s22
    %s25 = sphi 0, %s23
    %s26 = sphi 0, %s24
    %s38 = sphi 0, %s40
    %s41 = sphi 0, %s38
    %s42 = sphi 0, %s41
    %s58 = sphi 0, %s42
    %s62 = sphi 0, %s62
    %s64 = sphi 0, %s62
    %s65 = sphi 0, %s64
    %s79 = sphi 0, %s65
    %s83 = sphi 0, %s83
    %s85 = sphi 0, %s83
    %s86 = sphi 0, %s85
    %s100 = sphi 0, %s86
    %s104 = sphi 0, %s104
    %s106 = sphi 0, %s104
    %s107 = sphi 0, %s106
    %s121 = sphi 0, %s107
    %s125 = sphi 0, %s125
    %s127 = sphi 0, %s125
    %s128 = sphi 0, %s127
    %s142 = sphi 0, %s128
    %s146 = sphi 0, %s146
    %s148 = sphi 0, %s146
    %s149 = sphi 0, %s148
    %s163 = sphi 0, %s149
    %s169 = sphi 0, %s171
    %s172 = sphi 0, %s169
    %s173 = sphi 0, %s172
    %s189 = sphi 0, %s173
  $region4: #{classification_forward.1} parent=0 // loop_header_branch
    %17 = sbr.rel (%p15) target = $region8
  $region5: #{classification_forward.1} parent=0 // loop_body
    %s19 = ssub.s32 %s14, 1
    %s20 = ssub.s32 %s14, 2
    %s27 = sadd.s32 1, %s22
    %p28 = scmp.ge.s32.totalorder %s27, 1
    %s29 = scalar_select %p28, 0, %s27
    %s30 = sadd.s32 1, %s21
    %s31 = scalar_select %p28, %s30, %s21
    %p32 = scmp.ge.s32.totalorder %s31, 2
    %s33 = scalar_select %p32, 0, %s31
    %s34 = ssub.s32 %s21, %s33
    %s35 = ssub.s32 %s22, %s29
    %s36 = sor.u32 %s34, %s35
    %p37 = scmp.eq.s32.totalorder %s36, 0
    %s39 = sadd.s32 %s38, 1
    %s40 = scalar_select %p37, %s38, %s39
    %p43 = pneg %p37
    %p44 = scmp.eq.s32.totalorder %s14, 1
    %p45 = por %p43, %p44
    %p46 = scmp.ne.s32.totalorder %s38, %s41
    %p47 = scmp.eq.s32.totalorder %s14, 0
    %p48 = por %p46, %p47
    %p49 = scmp.ne.s32.totalorder %s38, %s41
    %p50 = scmp.eq.s32.totalorder %s19, 1
    %p51 = por %p49, %p50
    %p52 = scmp.ne.s32.totalorder %s41, %s42
    %p53 = scmp.eq.s32.totalorder %s19, 0
    %p54 = por %p52, %p53
    %p55 = scmp.ne.s32.totalorder %s41, %s42
    %p56 = scmp.eq.s32.totalorder %s20, 1
    %p57 = por %p55, %p56
    %p59 = scmp.ne.s32.totalorder %s42, %s58
    %p60 = scmp.eq.s32.totalorder %s20, 0
    %p61 = por %p59, %p60
    %s63 = sadd.s32 %s62, 1
    %p66 = scmp.eq.s32.totalorder %s14, 1
    %p67 = scmp.ne.s32.totalorder %s62, %s64
    %p68 = scmp.eq.s32.totalorder %s14, 0
    %p69 = por %p67, %p68
    %p70 = scmp.ne.s32.totalorder %s62, %s64
    %p71 = scmp.eq.s32.totalorder %s19, 1
    %p72 = por %p70, %p71
    %p73 = scmp.ne.s32.totalorder %s64, %s65
    %p74 = scmp.eq.s32.totalorder %s19, 0
    %p75 = por %p73, %p74
    %p76 = scmp.ne.s32.totalorder %s64, %s65
    %p77 = scmp.eq.s32.totalorder %s20, 1
    %p78 = por %p76, %p77
    %p80 = scmp.ne.s32.totalorder %s65, %s79
    %p81 = scmp.eq.s32.totalorder %s20, 0
    %p82 = por %p80, %p81
    %s84 = sadd.s32 %s83, 1
    %p87 = scmp.eq.s32.totalorder %s14, 1
    %p88 = scmp.ne.s32.totalorder %s83, %s85
    %p89 = scmp.eq.s32.totalorder %s14, 0
    %p90 = por %p88, %p89
    %p91 = scmp.ne.s32.totalorder %s83, %s85
    %p92 = scmp.eq.s32.totalorder %s19, 1
    %p93 = por %p91, %p92
    %p94 = scmp.ne.s32.totalorder %s85, %s86
    %p95 = scmp.eq.s32.totalorder %s19, 0
    %p96 = por %p94, %p95
    %p97 = scmp.ne.s32.totalorder %s85, %s86
    %p98 = scmp.eq.s32.totalorder %s20, 1
    %p99 = por %p97, %p98
    %p101 = scmp.ne.s32.totalorder %s86, %s100
    %p102 = scmp.eq.s32.totalorder %s20, 0
    %p103 = por %p101, %p102
    %s105 = sadd.s32 %s104, 1
    %p108 = scmp.eq.s32.totalorder %s14, 1
    %p109 = scmp.ne.s32.totalorder %s104, %s106
    %p110 = scmp.eq.s32.totalorder %s14, 0
    %p111 = por %p109, %p110
    %p112 = scmp.ne.s32.totalorder %s104, %s106
    %p113 = scmp.eq.s32.totalorder %s19, 1
    %p114 = por %p112, %p113
    %p115 = scmp.ne.s32.totalorder %s106, %s107
    %p116 = scmp.eq.s32.totalorder %s19, 0
    %p117 = por %p115, %p116
    %p118 = scmp.ne.s32.totalorder %s106, %s107
    %p119 = scmp.eq.s32.totalorder %s20, 1
    %p120 = por %p118, %p119
    %p122 = scmp.ne.s32.totalorder %s107, %s121
    %p123 = scmp.eq.s32.totalorder %s20, 0
    %p124 = por %p122, %p123
    %s126 = sadd.s32 %s125, 1
    %p129 = scmp.eq.s32.totalorder %s14, 1
    %p130 = scmp.ne.s32.totalorder %s125, %s127
    %p131 = scmp.eq.s32.totalorder %s14, 0
    %p132 = por %p130, %p131
    %p133 = scmp.ne.s32.totalorder %s125, %s127
    %p134 = scmp.eq.s32.totalorder %s19, 1
    %p135 = por %p133, %p134
    %p136 = scmp.ne.s32.totalorder %s127, %s128
    %p137 = scmp.eq.s32.totalorder %s19, 0
    %p138 = por %p136, %p137
    %p139 = scmp.ne.s32.totalorder %s127, %s128
    %p140 = scmp.eq.s32.totalorder %s20, 1
    %p141 = por %p139, %p140
    %p143 = scmp.ne.s32.totalorder %s128, %s142
    %p144 = scmp.eq.s32.totalorder %s20, 0
    %p145 = por %p143, %p144
    %s147 = sadd.s32 %s146, 1
    %p150 = scmp.eq.s32.totalorder %s14, 1
    %p151 = scmp.ne.s32.totalorder %s146, %s148
    %p152 = scmp.eq.s32.totalorder %s14, 0
    %p153 = por %p151, %p152
    %p154 = scmp.ne.s32.totalorder %s146, %s148
    %p155 = scmp.eq.s32.totalorder %s19, 1
    %p156 = por %p154, %p155
    %p157 = scmp.ne.s32.totalorder %s148, %s149
    %p158 = scmp.eq.s32.totalorder %s19, 0
    %p159 = por %p157, %p158
    %p160 = scmp.ne.s32.totalorder %s148, %s149
    %p161 = scmp.eq.s32.totalorder %s20, 1
    %p162 = por %p160, %p161
    %p164 = scmp.ne.s32.totalorder %s149, %s163
    %p165 = scmp.eq.s32.totalorder %s20, 0
    %p166 = por %p164, %p165
    %s167 = ssub.s32 %s21, %s33
    %p168 = scmp.eq.s32.totalorder %s167, 0
    %s170 = sadd.s32 %s169, 1
    %s171 = scalar_select %p168, %s169, %s170
    %p174 = pneg %p168
    %p175 = scmp.eq.s32.totalorder %s14, 1
    %p176 = por %p174, %p175
    %p177 = scmp.ne.s32.totalorder %s169, %s172
    %p178 = scmp.eq.s32.totalorder %s14, 0
    %p179 = por %p177, %p178
    %p180 = scmp.ne.s32.totalorder %s169, %s172
    %p181 = scmp.eq.s32.totalorder %s19, 1
    %p182 = por %p180, %p181
    %p183 = scmp.ne.s32.totalorder %s172, %s173
    %p184 = scmp.eq.s32.totalorder %s19, 0
    %p185 = por %p183, %p184
    %p186 = scmp.ne.s32.totalorder %s172, %s173
    %p187 = scmp.eq.s32.totalorder %s20, 1
    %p188 = por %p186, %p187
    %p190 = scmp.ne.s32.totalorder %s173, %s189
    %p191 = scmp.eq.s32.totalorder %s20, 0
    %p192 = por %p190, %p191
    %p193 = scmp.le.s32.totalorder 1, %s14
    %p194 = scmp.lt.s32.totalorder %s14, 3
    %p195 = pnand %p193, %p194
    %p196 = pneg %p195
    // Predicated region
    $region9: #{classification_forward.1} parent=5 // pred_check
      _
    $region10: #{classification_forward.1} parent=5 // pred_check_branch
      %198 = sbr.rel (%p195) target = $region12
    $region11: #{classification_forward.1} parent=5 // pred_region
      %s199 = ssub.s32 %s14, 1
      // Predicated region
      $region13: #{classification_forward.1} parent=11 // pred_check
        %p200 = pneg %p75
      $region14: #{classification_forward.1} parent=11 // pred_check_branch
        %202 = sbr.rel (%p200) target = $region16
      $region15: #{classification_forward.1} parent=11 // pred_region
        _
      $region16: #{classification_forward.1} parent=11 // pred_fallthru
        _
      // Predicated region
      $region17: #{classification_forward.1} parent=11 // pred_check
        %p203 = pneg %p96
      $region18: #{classification_forward.1} parent=11 // pred_check_branch
        %205 = sbr.rel (%p203) target = $region20
      $region19: #{classification_forward.1} parent=11 // pred_region
        _
      $region20: #{classification_forward.1} parent=11 // pred_fallthru
        _
      // Predicated region
      $region21: #{classification_forward.1} parent=11 // pred_check
        %p206 = pneg %p117
      $region22: #{classification_forward.1} parent=11 // pred_check_branch
        %208 = sbr.rel (%p206) target = $region24
      $region23: #{classification_forward.1} parent=11 // pred_region
        _
      $region24: #{classification_forward.1} parent=11 // pred_fallthru
        _
      // Predicated region
      $region25: #{classification_forward.1} parent=11 // pred_check
        %p209 = pneg %p138
      $region26: #{classification_forward.1} parent=11 // pred_check_branch
        %211 = sbr.rel (%p209) target = $region28
      $region27: #{classification_forward.1} parent=11 // pred_region
        _
      $region28: #{classification_forward.1} parent=11 // pred_fallthru
        _
      // Predicated region
      $region29: #{classification_forward.1} parent=11 // pred_check
        %p212 = pneg %p159
      $region30: #{classification_forward.1} parent=11 // pred_check_branch
        %214 = sbr.rel (%p212) target = $region32
      $region31: #{classification_forward.1} parent=11 // pred_region
        _
      $region32: #{classification_forward.1} parent=11 // pred_fallthru
        _
    $region12: #{classification_forward.1} parent=5 // pred_fallthru
      _
    %p215 = scmp.lt.s32.totalorder %s14, 2
    // Predicated region
    $region33: #{classification_forward.1} parent=5 // pred_check
      %p216 = pneg %p215
    $region34: #{classification_forward.1} parent=5 // pred_check_branch
      %218 = sbr.rel (%p216) target = $region36
    $region35: #{classification_forward.1} parent=5 // pred_region
      // Predicated region
      $region37: #{classification_forward.1} parent=35 // pred_check
        %p219 = pneg %p48
      $region38: #{classification_forward.1} parent=35 // pred_check_branch
        %221 = sbr.rel (%p219) target = $region40
      $region39: #{classification_forward.1} parent=35 // pred_region
        %p222 = scmp.lt.s32.totalorder %s21, 1
        %s223 = scalar_select %p222, %s21, 1
        %p224 = scmp.lt.s32.totalorder %s22, 0
        %s225 = scalar_select %p224, %s22, 0
        %s226 = smul.addr %s225, 41
        %s227 = smul.addr %s223, 41
        %s228 = sadd.s32 %s226, %s227
        %s229 = smul.addr %s228, 4
        %s230 = scalar_lea.vmem %s0, %s229
      $region40: #{classification_forward.1} parent=35 // pred_fallthru
        _
    $region36: #{classification_forward.1} parent=5 // pred_fallthru
      _
    %p231 = scmp.le.s32.totalorder 1, %s14
    %p232 = scmp.lt.s32.totalorder %s14, 3
    %p233 = pnand %p231, %p232
    %p234 = pneg %p233
    // Predicated region
    $region41: #{classification_forward.1} parent=5 // pred_check
      _
    $region42: #{classification_forward.1} parent=5 // pred_check_branch
      %236 = sbr.rel (%p233) target = $region44
    $region43: #{classification_forward.1} parent=5 // pred_region
      %s237 = ssub.s32 %s14, 1
      %p238 = scmp.lt.s32.totalorder %s23, 1
      %s239 = scalar_select %p238, %s23, 1
      %p240 = scmp.lt.s32.totalorder %s24, 0
      %s241 = scalar_select %p240, %s24, 0
      %s242 = smul.addr %s241, 41
      %s243 = smul.addr %s239, 41
      %s244 = sadd.s32 %s242, %s243
      %s245 = smul.addr %s244, 4
      %s246 = scalar_lea.vmem %s0, %s245
      %p247 = pneg %p54
      %p248 = pneg %p51
      %p249 = pneg %p75
      %p250 = pneg %p72
      %p251 = pneg %p96
      %p252 = pneg %p93
      %p253 = pneg %p117
      %p254 = pneg %p114
      %p255 = pneg %p138
      %p256 = pneg %p135
      %p257 = pneg %p159
      %p258 = pneg %p156
      %p259 = pneg %p185
      %p260 = pneg %p182
      %p261 = scmp.lt.s32.totalorder %s23, 1
      %s262 = scalar_select %p261, %s23, 1
      %s263 = scalar_lea.vmem %s6, %s262
      %p264 = scmp.lt.s32.totalorder %s23, 1
      %s265 = scalar_select %p264, %s23, 1
      %p266 = scmp.lt.s32.totalorder %s24, 0
      %s267 = scalar_select %p266, %s24, 0
      %s268 = smul.addr %s267, 41
      %s269 = smul.addr %s265, 41
      %s270 = sadd.s32 %s268, %s269
      %s271 = smul.addr %s270, 4
      %s272 = scalar_lea.vmem %s0, %s271
      %p273 = scmp.lt.s32.totalorder %s23, 1
      %s274 = scalar_select %p273, %s23, 1
      %s275 = scalar_lea.vmem %s6, %s274
      %p277 = scmp.eq.s32.totalorder %s24, 0
      // Predicated region
      $region45: #{classification_forward.1} parent=43 // pred_check
        %p278 = pneg %p277
      $region46: #{classification_forward.1} parent=43 // pred_check_branch
        %280 = sbr.rel (%p278) target = $region48
      $region47: #{classification_forward.1} parent=43 // pred_region
        %281 = vst [vmem:[#allocation2] sm:$0x1] 0.0
      $region48: #{classification_forward.1} parent=43 // pred_fallthru
        _
      %v282 = vld [vmem:[%s272] sm:$0xf]
      %v283 = vld [vmem:[%s272 + $0x4] sm:$0xf]
      %v284 = vld [vmem:[%s272 + $0x8] sm:$0xf]
      %v285 = vld [vmem:[%s272 + $0xc] sm:$0xf]
      %v286 = vld [vmem:[%s272 + $0x10] sm:$0xf]
      %v287 = vld [vmem:[%s272 + $0x14] sm:$0xf]
      %v288 = vld [vmem:[%s272 + $0x18] sm:$0xf]
      %v289 = vld [vmem:[%s272 + $0x1c] sm:$0xf]
      %v290 = vld [vmem:[%s272 + $0x20] sm:$0xf]
      %v291 = vld [vmem:[%s272 + $0x24] sm:$0xf]
      %v292 = vld [vmem:[%s272 + $0x28] sm:$0xf]
      %v293 = vld [vmem:[%s272 + $0x2c] sm:$0xf]
      %v294 = vld [vmem:[%s272 + $0x30] sm:$0xf]
      %v295 = vld [vmem:[%s272 + $0x34] sm:$0xf]
      %v296 = vld [vmem:[%s272 + $0x38] sm:$0xf]
      %v297 = vld [vmem:[%s272 + $0x3c] sm:$0xf]
      %v298 = vld [vmem:[%s272 + $0x40] sm:$0xf]
      %v299 = vld [vmem:[%s272 + $0x44] sm:$0xf]
      %v300 = vld [vmem:[%s272 + $0x48] sm:$0xf]
      %v301 = vld [vmem:[%s272 + $0x4c] sm:$0xf]
      %v302 = vld [vmem:[%s272 + $0x50] sm:$0xf]
      %v303 = vld [vmem:[%s272 + $0x54] sm:$0xf]
      %v304 = vld [vmem:[%s272 + $0x58] sm:$0xf]
      %v305 = vld [vmem:[%s272 + $0x5c] sm:$0xf]
      %v306 = vld [vmem:[%s272 + $0x60] sm:$0xf]
      %v307 = vld [vmem:[%s272 + $0x64] sm:$0xf]
      %v308 = vld [vmem:[%s272 + $0x68] sm:$0xf]
      %v309 = vld [vmem:[%s272 + $0x6c] sm:$0xf]
      %v310 = vld [vmem:[%s272 + $0x70] sm:$0xf]
      %v311 = vld [vmem:[%s272 + $0x74] sm:$0xf]
      %v312 = vld [vmem:[%s272 + $0x78] sm:$0xf]
      %v313 = vld [vmem:[%s272 + $0x7c] sm:$0xf]
      %v314 = vld [vmem:[%s272 + $0x80] sm:$0xf]
      %v315 = vld [vmem:[%s272 + $0x84] sm:$0xf]
      %v316 = vld [vmem:[%s272 + $0x88] sm:$0xf]
      %v317 = vld [vmem:[%s272 + $0x8c] sm:$0xf]
      %v318 = vunpack.c.l.bf16 %v282
      %v319 = vunpack.c.l.bf16 %v283
      %v320 = vunpack.c.l.bf16 %v284
      %v321 = vunpack.c.l.bf16 %v285
      %v322 = vunpack.c.l.bf16 %v286
      %v323 = vunpack.c.l.bf16 %v287
      %v324 = vunpack.c.l.bf16 %v288
      %v325 = vunpack.c.l.bf16 %v289
      %v326 = vunpack.c.l.bf16 %v290
      %v327 = vunpack.c.l.bf16 %v291
      %v328 = vunpack.c.l.bf16 %v292
      %v329 = vunpack.c.l.bf16 %v293
      %v330 = vunpack.c.l.bf16 %v294
      %v331 = vunpack.c.l.bf16 %v295
      %v332 = vunpack.c.l.bf16 %v296
      %v333 = vunpack.c.l.bf16 %v297
      %v334 = vunpack.c.l.bf16 %v298
      %v335 = vunpack.c.l.bf16 %v299
      %v336 = vunpack.c.l.bf16 %v300
      %v337 = vunpack.c.l.bf16 %v301
      %v338 = vunpack.c.l.bf16 %v302
      %v339 = vunpack.c.l.bf16 %v303
      %v340 = vunpack.c.l.bf16 %v304
      %v341 = vunpack.c.l.bf16 %v305
      %v342 = vunpack.c.l.bf16 %v306
      %v343 = vunpack.c.l.bf16 %v307
      %v344 = vunpack.c.l.bf16 %v308
      %v345 = vunpack.c.l.bf16 %v309
      %v346 = vunpack.c.l.bf16 %v310
      %v347 = vunpack.c.l.bf16 %v311
      %v348 = vunpack.c.l.bf16 %v312
      %v349 = vunpack.c.l.bf16 %v313
      %v350 = vunpack.c.l.bf16 %v314
      %v351 = vunpack.c.l.bf16 %v315
      %v352 = vunpack.c.l.bf16 %v316
      %v353 = vunpack.c.l.bf16 %v317
      %v354 = vld [vmem:[%s272 + $0x90] sm:$0x1]
      %v355 = vunpack.c.l.bf16 %v354
      %v356 = vld [vmem:[%s272] sm:$0xe]
      %v357 = vunpack.c.l.bf16 %v356
      %v358 = vld [vmem:[%s272 + $0x8] sm:$0xe]
      %v359 = vld [vmem:[%s272 + $0x90] sm:$0xf]
      %v360 = vld [vmem:[%s272 + $0x94] sm:$0xf]
      %v361 = vld [vmem:[%s272 + $0x98] sm:$0x1]
      %v362 = vunpack.c.l.bf16 %v358
      %v363 = vunpack.c.l.bf16 %v359
      %v364 = vunpack.c.l.bf16 %v360
      %v365 = vunpack.c.l.bf16 %v361
      %v366 = vld [vmem:[%s272 + $0x98] sm:$0x3]
      %v367 = vunpack.c.l.bf16 %v366
      %v368 = vld [vmem:[%s272 + $0x8] sm:$0xc]
      %v369 = vunpack.c.l.bf16 %v368
      %v370 = vld [vmem:[%s272 + $0x10] sm:$0xc]
      %v371 = vld [vmem:[%s272 + $0x98] sm:$0xf]
      %v372 = vld [vmem:[%s272 + $0x9c] sm:$0xf]
      %v373 = vld [vmem:[%s272 + $0xa0] sm:$0x3]
      %v374 = vunpack.c.l.bf16 %v370
      %v375 = vunpack.c.l.bf16 %v371
      %v376 = vunpack.c.l.bf16 %v372
      %v377 = vunpack.c.l.bf16 %v373
      %v378 = vld [vmem:[%s272 + $0xa0] sm:$0x7]
      %v379 = vunpack.c.l.bf16 %v378
      %v380 = vld [vmem:[%s272 + $0x10] sm:$0x8]
      %v381 = vunpack.c.l.bf16 %v380
      %vm419 = vcmask 1046528
      %v420 = vrot.slane %v318, 1
      %v421 = vrot.slane %v319, 1
      %v422 = vsel %vm419, %v420, %v421
      %v423 = vrot.slane %v320, 1
      %v424 = vsel %vm419, %v421, %v423
      %v425 = vrot.slane %v321, 1
      %v426 = vsel %vm419, %v423, %v425
      %v427 = vrot.slane %v322, 1
      %v428 = vsel %vm419, %v425, %v427
      %v429 = vrot.slane %v323, 1
      %v430 = vsel %vm419, %v427, %v429
      %v431 = vrot.slane %v324, 1
      %v432 = vsel %vm419, %v429, %v431
      %v433 = vrot.slane %v325, 1
      %v434 = vsel %vm419, %v431, %v433
      %v435 = vrot.slane %v326, 1
      %v436 = vsel %vm419, %v433, %v435
      %v437 = vrot.slane %v327, 1
      %v438 = vsel %vm419, %v435, %v437
      %v439 = vrot.slane %v328, 1
      %v440 = vsel %vm419, %v437, %v439
      %v441 = vrot.slane %v329, 1
      %v442 = vsel %vm419, %v439, %v441
      %v443 = vrot.slane %v330, 1
      %v444 = vsel %vm419, %v441, %v443
      %v445 = vrot.slane %v331, 1
      %v446 = vsel %vm419, %v443, %v445
      %v447 = vrot.slane %v332, 1
      %v448 = vsel %vm419, %v445, %v447
      %v449 = vrot.slane %v333, 1
      %v450 = vsel %vm419, %v447, %v449
      %v451 = vrot.slane %v334, 1
      %v452 = vsel %vm419, %v449, %v451
      %v453 = vrot.slane %v335, 1
      %v454 = vsel %vm419, %v451, %v453
      %v455 = vrot.slane %v336, 1
      %v456 = vsel %vm419, %v453, %v455
      %v457 = vrot.slane %v337, 1
      %v458 = vsel %vm419, %v455, %v457
      %v459 = vrot.slane %v338, 1
      %v460 = vsel %vm419, %v457, %v459
      %v461 = vrot.slane %v339, 1
      %v462 = vsel %vm419, %v459, %v461
      %v463 = vrot.slane %v340, 1
      %v464 = vsel %vm419, %v461, %v463
      %v465 = vrot.slane %v341, 1
      %v466 = vsel %vm419, %v463, %v465
      %v467 = vrot.slane %v342, 1
      %v468 = vsel %vm419, %v465, %v467
      %v469 = vrot.slane %v343, 1
      %v470 = vsel %vm419, %v467, %v469
      %v471 = vrot.slane %v344, 1
      %v472 = vsel %vm419, %v469, %v471
      %v473 = vrot.slane %v345, 1
      %v474 = vsel %vm419, %v471, %v473
      %v475 = vrot.slane %v346, 1
      %v476 = vsel %vm419, %v473, %v475
      %v477 = vrot.slane %v347, 1
      %v478 = vsel %vm419, %v475, %v477
      %v479 = vrot.slane %v348, 1
      %v480 = vsel %vm419, %v477, %v479
      %v481 = vrot.slane %v349, 1
      %v482 = vsel %vm419, %v479, %v481
      %v483 = vrot.slane %v350, 1
      %v484 = vsel %vm419, %v481, %v483
      %v485 = vrot.slane %v351, 1
      %v486 = vsel %vm419, %v483, %v485
      %v487 = vrot.slane %v352, 1
      %v488 = vsel %vm419, %v485, %v487
      %v489 = vrot.slane %v353, 1
      %v490 = vsel %vm419, %v487, %v489
      %v491 = vrot.slane %v355, 1
      %v492 = vsel %vm419, %v489, %v491
      %493 = vrot.lane.b32.xlu0 %v422, 4
      %v494 = vpop.permute.xlu0 %493
      %495 = vrot.lane.b32.xlu0 %v424, 4
      %v496 = vpop.permute.xlu0 %495
      %497 = vrot.lane.b32.xlu0 %v426, 4
      %v498 = vpop.permute.xlu0 %497
      %499 = vrot.lane.b32.xlu0 %v428, 4
      %v500 = vpop.permute.xlu0 %499
      %501 = vrot.lane.b32.xlu0 %v430, 4
      %v502 = vpop.permute.xlu0 %501
      %503 = vrot.lane.b32.xlu0 %v432, 4
      %v504 = vpop.permute.xlu0 %503
      %505 = vrot.lane.b32.xlu0 %v434, 4
      %v506 = vpop.permute.xlu0 %505
      %507 = vrot.lane.b32.xlu0 %v436, 4
      %v508 = vpop.permute.xlu0 %507
      %509 = vrot.lane.b32.xlu0 %v438, 4
      %v510 = vpop.permute.xlu0 %509
      %511 = vrot.lane.b32.xlu0 %v440, 4
      %v512 = vpop.permute.xlu0 %511
      %513 = vrot.lane.b32.xlu0 %v442, 4
      %v514 = vpop.permute.xlu0 %513
      %515 = vrot.lane.b32.xlu0 %v444, 4
      %v516 = vpop.permute.xlu0 %515
      %517 = vrot.lane.b32.xlu0 %v446, 4
      %v518 = vpop.permute.xlu0 %517
      %519 = vrot.lane.b32.xlu0 %v448, 4
      %v520 = vpop.permute.xlu0 %519
      %521 = vrot.lane.b32.xlu0 %v450, 4
      %v522 = vpop.permute.xlu0 %521
      %523 = vrot.lane.b32.xlu0 %v452, 4
      %v524 = vpop.permute.xlu0 %523
      %525 = vrot.lane.b32.xlu0 %v454, 4
      %v526 = vpop.permute.xlu0 %525
      %527 = vrot.lane.b32.xlu0 %v456, 4
      %v528 = vpop.permute.xlu0 %527
      %529 = vrot.lane.b32.xlu0 %v458, 4
      %v530 = vpop.permute.xlu0 %529
      %531 = vrot.lane.b32.xlu0 %v460, 4
      %v532 = vpop.permute.xlu0 %531
      %533 = vrot.lane.b32.xlu0 %v462, 4
      %v534 = vpop.permute.xlu0 %533
      %535 = vrot.lane.b32.xlu0 %v464, 4
      %v536 = vpop.permute.xlu0 %535
      %537 = vrot.lane.b32.xlu0 %v466, 4
      %v538 = vpop.permute.xlu0 %537
      %539 = vrot.lane.b32.xlu0 %v468, 4
      %v540 = vpop.permute.xlu0 %539
      %541 = vrot.lane.b32.xlu0 %v470, 4
      %v542 = vpop.permute.xlu0 %541
      %543 = vrot.lane.b32.xlu0 %v472, 4
      %v544 = vpop.permute.xlu0 %543
      %545 = vrot.lane.b32.xlu0 %v474, 4
      %v546 = vpop.permute.xlu0 %545
      %547 = vrot.lane.b32.xlu0 %v476, 4
      %v548 = vpop.permute.xlu0 %547
      %549 = vrot.lane.b32.xlu0 %v478, 4
      %v550 = vpop.permute.xlu0 %549
      %551 = vrot.lane.b32.xlu0 %v480, 4
      %v552 = vpop.permute.xlu0 %551
      %553 = vrot.lane.b32.xlu0 %v482, 4
      %v554 = vpop.permute.xlu0 %553
      %555 = vrot.lane.b32.xlu0 %v484, 4
      %v556 = vpop.permute.xlu0 %555
      %557 = vrot.lane.b32.xlu0 %v486, 4
      %v558 = vpop.permute.xlu0 %557
      %559 = vrot.lane.b32.xlu0 %v488, 4
      %v560 = vpop.permute.xlu0 %559
      %561 = vrot.lane.b32.xlu0 %v490, 4
      %v562 = vpop.permute.xlu0 %561
      %563 = vrot.lane.b32.xlu0 %v492, 4
      %v564 = vpop.permute.xlu0 %563
      %vm602 = vcmask 1045504
      %v603 = vrot.slane %v357, 2
      %v604 = vrot.slane %v319, 2
      %v605 = vsel %vm602, %v603, %v604
      %v606 = vrot.slane %v320, 2
      %v607 = vsel %vm602, %v604, %v606
      %v608 = vrot.slane %v321, 2
      %v609 = vsel %vm602, %v606, %v608
      %v610 = vrot.slane %v322, 2
      %v611 = vsel %vm602, %v608, %v610
      %v612 = vrot.slane %v323, 2
      %v613 = vsel %vm602, %v610, %v612
      %v614 = vrot.slane %v324, 2
      %v615 = vsel %vm602, %v612, %v614
      %v616 = vrot.slane %v325, 2
      %v617 = vsel %vm602, %v614, %v616
      %v618 = vrot.slane %v326, 2
      %v619 = vsel %vm602, %v616, %v618
      %v620 = vrot.slane %v327, 2
      %v621 = vsel %vm602, %v618, %v620
      %v622 = vrot.slane %v328, 2
      %v623 = vsel %vm602, %v620, %v622
      %v624 = vrot.slane %v329, 2
      %v625 = vsel %vm602, %v622, %v624
      %v626 = vrot.slane %v330, 2
      %v627 = vsel %vm602, %v624, %v626
      %v628 = vrot.slane %v331, 2
      %v629 = vsel %vm602, %v626, %v628
      %v630 = vrot.slane %v332, 2
      %v631 = vsel %vm602, %v628, %v630
      %v632 = vrot.slane %v333, 2
      %v633 = vsel %vm602, %v630, %v632
      %v634 = vrot.slane %v334, 2
      %v635 = vsel %vm602, %v632, %v634
      %v636 = vrot.slane %v335, 2
      %v637 = vsel %vm602, %v634, %v636
      %v638 = vrot.slane %v336, 2
      %v639 = vsel %vm602, %v636, %v638
      %v640 = vrot.slane %v337, 2
      %v641 = vsel %vm602, %v638, %v640
      %v642 = vrot.slane %v338, 2
      %v643 = vsel %vm602, %v640, %v642
      %v644 = vrot.slane %v339, 2
      %v645 = vsel %vm602, %v642, %v644
      %v646 = vrot.slane %v340, 2
      %v647 = vsel %vm602, %v644, %v646
      %v648 = vrot.slane %v341, 2
      %v649 = vsel %vm602, %v646, %v648
      %v650 = vrot.slane %v342, 2
      %v651 = vsel %vm602, %v648, %v650
      %v652 = vrot.slane %v343, 2
      %v653 = vsel %vm602, %v650, %v652
      %v654 = vrot.slane %v344, 2
      %v655 = vsel %vm602, %v652, %v654
      %v656 = vrot.slane %v345, 2
      %v657 = vsel %vm602, %v654, %v656
      %v658 = vrot.slane %v346, 2
      %v659 = vsel %vm602, %v656, %v658
      %v660 = vrot.slane %v347, 2
      %v661 = vsel %vm602, %v658, %v660
      %v662 = vrot.slane %v348, 2
      %v663 = vsel %vm602, %v660, %v662
      %v664 = vrot.slane %v349, 2
      %v665 = vsel %vm602, %v662, %v664
      %v666 = vrot.slane %v350, 2
      %v667 = vsel %vm602, %v664, %v666
      %v668 = vrot.slane %v351, 2
      %v669 = vsel %vm602, %v666, %v668
      %v670 = vrot.slane %v352, 2
      %v671 = vsel %vm602, %v668, %v670
      %v672 = vrot.slane %v353, 2
      %v673 = vsel %vm602, %v670, %v672
      %v674 = vrot.slane %v355, 2
      %v675 = vsel %vm602, %v672, %v674
      %676 = vrot.lane.b32.xlu0 %v605, 8
      %v677 = vpop.permute.xlu0 %676
      %678 = vrot.lane.b32.xlu0 %v607, 8
      %v679 = vpop.permute.xlu0 %678
      %680 = vrot.lane.b32.xlu0 %v609, 8
      %v681 = vpop.permute.xlu0 %680
      %682 = vrot.lane.b32.xlu0 %v611, 8
      %v683 = vpop.permute.xlu0 %682
      %684 = vrot.lane.b32.xlu0 %v613, 8
      %v685 = vpop.permute.xlu0 %684
      %686 = vrot.lane.b32.xlu0 %v615, 8
      %v687 = vpop.permute.xlu0 %686
      %688 = vrot.lane.b32.xlu0 %v617, 8
      %v689 = vpop.permute.xlu0 %688
      %690 = vrot.lane.b32.xlu0 %v619, 8
      %v691 = vpop.permute.xlu0 %690
      %692 = vrot.lane.b32.xlu0 %v621, 8
      %v693 = vpop.permute.xlu0 %692
      %694 = vrot.lane.b32.xlu0 %v623, 8
      %v695 = vpop.permute.xlu0 %694
      %696 = vrot.lane.b32.xlu0 %v625, 8
      %v697 = vpop.permute.xlu0 %696
      %698 = vrot.lane.b32.xlu0 %v627, 8
      %v699 = vpop.permute.xlu0 %698
      %700 = vrot.lane.b32.xlu0 %v629, 8
      %v701 = vpop.permute.xlu0 %700
      %702 = vrot.lane.b32.xlu0 %v631, 8
      %v703 = vpop.permute.xlu0 %702
      %704 = vrot.lane.b32.xlu0 %v633, 8
      %v705 = vpop.permute.xlu0 %704
      %706 = vrot.lane.b32.xlu0 %v635, 8
      %v707 = vpop.permute.xlu0 %706
      %708 = vrot.lane.b32.xlu0 %v637, 8
      %v709 = vpop.permute.xlu0 %708
      %710 = vrot.lane.b32.xlu0 %v639, 8
      %v711 = vpop.permute.xlu0 %710
      %712 = vrot.lane.b32.xlu0 %v641, 8
      %v713 = vpop.permute.xlu0 %712
      %714 = vrot.lane.b32.xlu0 %v643, 8
      %v715 = vpop.permute.xlu0 %714
      %716 = vrot.lane.b32.xlu0 %v645, 8
      %v717 = vpop.permute.xlu0 %716
      %718 = vrot.lane.b32.xlu0 %v647, 8
      %v719 = vpop.permute.xlu0 %718
      %720 = vrot.lane.b32.xlu0 %v649, 8
      %v721 = vpop.permute.xlu0 %720
      %722 = vrot.lane.b32.xlu0 %v651, 8
      %v723 = vpop.permute.xlu0 %722
      %724 = vrot.lane.b32.xlu0 %v653, 8
      %v725 = vpop.permute.xlu0 %724
      %726 = vrot.lane.b32.xlu0 %v655, 8
      %v727 = vpop.permute.xlu0 %726
      %728 = vrot.lane.b32.xlu0 %v657, 8
      %v729 = vpop.permute.xlu0 %728
      %730 = vrot.lane.b32.xlu0 %v659, 8
      %v731 = vpop.permute.xlu0 %730
      %732 = vrot.lane.b32.xlu0 %v661, 8
      %v733 = vpop.permute.xlu0 %732
      %734 = vrot.lane.b32.xlu0 %v663, 8
      %v735 = vpop.permute.xlu0 %734
      %736 = vrot.lane.b32.xlu0 %v665, 8
      %v737 = vpop.permute.xlu0 %736
      %738 = vrot.lane.b32.xlu0 %v667, 8
      %v739 = vpop.permute.xlu0 %738
      %740 = vrot.lane.b32.xlu0 %v669, 8
      %v741 = vpop.permute.xlu0 %740
      %742 = vrot.lane.b32.xlu0 %v671, 8
      %v743 = vpop.permute.xlu0 %742
      %744 = vrot.lane.b32.xlu0 %v673, 8
      %v745 = vpop.permute.xlu0 %744
      %746 = vrot.lane.b32.xlu0 %v675, 8
      %v747 = vpop.permute.xlu0 %746
      %v788 = vrot.slane %v362, 2
      %v789 = vsel %vm602, %v788, %v608
      %v790 = vrot.slane %v363, 2
      %v791 = vsel %vm602, %v672, %v790
      %v792 = vrot.slane %v364, 2
      %v793 = vsel %vm602, %v790, %v792
      %v794 = vrot.slane %v365, 2
      %v795 = vsel %vm602, %v792, %v794
      %796 = vrot.lane.b32.xlu0 %v789, 12
      %v797 = vpop.permute.xlu0 %796
      %798 = vrot.lane.b32.xlu0 %v611, 12
      %v799 = vpop.permute.xlu0 %798
      %800 = vrot.lane.b32.xlu0 %v613, 12
      %v801 = vpop.permute.xlu0 %800
      %802 = vrot.lane.b32.xlu0 %v615, 12
      %v803 = vpop.permute.xlu0 %802
      %804 = vrot.lane.b32.xlu0 %v617, 12
      %v805 = vpop.permute.xlu0 %804
      %806 = vrot.lane.b32.xlu0 %v619, 12
      %v807 = vpop.permute.xlu0 %806
      %808 = vrot.lane.b32.xlu0 %v621, 12
      %v809 = vpop.permute.xlu0 %808
      %810 = vrot.lane.b32.xlu0 %v623, 12
      %v811 = vpop.permute.xlu0 %810
      %812 = vrot.lane.b32.xlu0 %v625, 12
      %v813 = vpop.permute.xlu0 %812
      %814 = vrot.lane.b32.xlu0 %v627, 12
      %v815 = vpop.permute.xlu0 %814
      %816 = vrot.lane.b32.xlu0 %v629, 12
      %v817 = vpop.permute.xlu0 %816
      %818 = vrot.lane.b32.xlu0 %v631, 12
      %v819 = vpop.permute.xlu0 %818
      %820 = vrot.lane.b32.xlu0 %v633, 12
      %v821 = vpop.permute.xlu0 %820
      %822 = vrot.lane.b32.xlu0 %v635, 12
      %v823 = vpop.permute.xlu0 %822
      %824 = vrot.lane.b32.xlu0 %v637, 12
      %v825 = vpop.permute.xlu0 %824
      %826 = vrot.lane.b32.xlu0 %v639, 12
      %v827 = vpop.permute.xlu0 %826
      %828 = vrot.lane.b32.xlu0 %v641, 12
      %v829 = vpop.permute.xlu0 %828
      %830 = vrot.lane.b32.xlu0 %v643, 12
      %v831 = vpop.permute.xlu0 %830
      %832 = vrot.lane.b32.xlu0 %v645, 12
      %v833 = vpop.permute.xlu0 %832
      %834 = vrot.lane.b32.xlu0 %v647, 12
      %v835 = vpop.permute.xlu0 %834
      %836 = vrot.lane.b32.xlu0 %v649, 12
      %v837 = vpop.permute.xlu0 %836
      %838 = vrot.lane.b32.xlu0 %v651, 12
      %v839 = vpop.permute.xlu0 %838
      %840 = vrot.lane.b32.xlu0 %v653, 12
      %v841 = vpop.permute.xlu0 %840
      %842 = vrot.lane.b32.xlu0 %v655, 12
      %v843 = vpop.permute.xlu0 %842
      %844 = vrot.lane.b32.xlu0 %v657, 12
      %v845 = vpop.permute.xlu0 %844
      %846 = vrot.lane.b32.xlu0 %v659, 12
      %v847 = vpop.permute.xlu0 %846
      %848 = vrot.lane.b32.xlu0 %v661, 12
      %v849 = vpop.permute.xlu0 %848
      %850 = vrot.lane.b32.xlu0 %v663, 12
      %v851 = vpop.permute.xlu0 %850
      %852 = vrot.lane.b32.xlu0 %v665, 12
      %v853 = vpop.permute.xlu0 %852
      %854 = vrot.lane.b32.xlu0 %v667, 12
      %v855 = vpop.permute.xlu0 %854
      %856 = vrot.lane.b32.xlu0 %v669, 12
      %v857 = vpop.permute.xlu0 %856
      %858 = vrot.lane.b32.xlu0 %v671, 12
      %v859 = vpop.permute.xlu0 %858
      %860 = vrot.lane.b32.xlu0 %v673, 12
      %v861 = vpop.permute.xlu0 %860
      %862 = vrot.lane.b32.xlu0 %v791, 12
      %v863 = vpop.permute.xlu0 %862
      %864 = vrot.lane.b32.xlu0 %v793, 12
      %v865 = vpop.permute.xlu0 %864
      %866 = vrot.lane.b32.xlu0 %v795, 12
      %v867 = vpop.permute.xlu0 %866
      %vm905 = vcmask 1044480
      %v906 = vrot.slane %v362, 3
      %v907 = vrot.slane %v321, 3
      %v908 = vsel %vm905, %v906, %v907
      %v909 = vrot.slane %v322, 3
      %v910 = vsel %vm905, %v907, %v909
      %v911 = vrot.slane %v323, 3
      %v912 = vsel %vm905, %v909, %v911
      %v913 = vrot.slane %v324, 3
      %v914 = vsel %vm905, %v911, %v913
      %v915 = vrot.slane %v325, 3
      %v916 = vsel %vm905, %v913, %v915
      %v917 = vrot.slane %v326, 3
      %v918 = vsel %vm905, %v915, %v917
      %v919 = vrot.slane %v327, 3
      %v920 = vsel %vm905, %v917, %v919
      %v921 = vrot.slane %v328, 3
      %v922 = vsel %vm905, %v919, %v921
      %v923 = vrot.slane %v329, 3
      %v924 = vsel %vm905, %v921, %v923
      %v925 = vrot.slane %v330, 3
      %v926 = vsel %vm905, %v923, %v925
      %v927 = vrot.slane %v331, 3
      %v928 = vsel %vm905, %v925, %v927
      %v929 = vrot.slane %v332, 3
      %v930 = vsel %vm905, %v927, %v929
      %v931 = vrot.slane %v333, 3
      %v932 = vsel %vm905, %v929, %v931
      %v933 = vrot.slane %v334, 3
      %v934 = vsel %vm905, %v931, %v933
      %v935 = vrot.slane %v335, 3
      %v936 = vsel %vm905, %v933, %v935
      %v937 = vrot.slane %v336, 3
      %v938 = vsel %vm905, %v935, %v937
      %v939 = vrot.slane %v337, 3
      %v940 = vsel %vm905, %v937, %v939
      %v941 = vrot.slane %v338, 3
      %v942 = vsel %vm905, %v939, %v941
      %v943 = vrot.slane %v339, 3
      %v944 = vsel %vm905, %v941, %v943
      %v945 = vrot.slane %v340, 3
      %v946 = vsel %vm905, %v943, %v945
      %v947 = vrot.slane %v341, 3
      %v948 = vsel %vm905, %v945, %v947
      %v949 = vrot.slane %v342, 3
      %v950 = vsel %vm905, %v947, %v949
      %v951 = vrot.slane %v343, 3
      %v952 = vsel %vm905, %v949, %v951
      %v953 = vrot.slane %v344, 3
      %v954 = vsel %vm905, %v951, %v953
      %v955 = vrot.slane %v345, 3
      %v956 = vsel %vm905, %v953, %v955
      %v957 = vrot.slane %v346, 3
      %v958 = vsel %vm905, %v955, %v957
      %v959 = vrot.slane %v347, 3
      %v960 = vsel %vm905, %v957, %v959
      %v961 = vrot.slane %v348, 3
      %v962 = vsel %vm905, %v959, %v961
      %v963 = vrot.slane %v349, 3
      %v964 = vsel %vm905, %v961, %v963
      %v965 = vrot.slane %v350, 3
      %v966 = vsel %vm905, %v963, %v965
      %v967 = vrot.slane %v351, 3
      %v968 = vsel %vm905, %v965, %v967
      %v969 = vrot.slane %v352, 3
      %v970 = vsel %vm905, %v967, %v969
      %v971 = vrot.slane %v353, 3
      %v972 = vsel %vm905, %v969, %v971
      %v973 = vrot.slane %v363, 3
      %v974 = vsel %vm905, %v971, %v973
      %v975 = vrot.slane %v364, 3
      %v976 = vsel %vm905, %v973, %v975
      %v977 = vrot.slane %v367, 3
      %v978 = vsel %vm905, %v975, %v977
      %979 = vrot.lane.b32.xlu0 %v908, 16
      %v980 = vpop.permute.xlu0 %979
      %981 = vrot.lane.b32.xlu0 %v910, 16
      %v982 = vpop.permute.xlu0 %981
      %983 = vrot.lane.b32.xlu0 %v912, 16
      %v984 = vpop.permute.xlu0 %983
      %985 = vrot.lane.b32.xlu0 %v914, 16
      %v986 = vpop.permute.xlu0 %985
      %987 = vrot.lane.b32.xlu0 %v916, 16
      %v988 = vpop.permute.xlu0 %987
      %989 = vrot.lane.b32.xlu0 %v918, 16
      %v990 = vpop.permute.xlu0 %989
      %991 = vrot.lane.b32.xlu0 %v920, 16
      %v992 = vpop.permute.xlu0 %991
      %993 = vrot.lane.b32.xlu0 %v922, 16
      %v994 = vpop.permute.xlu0 %993
      %995 = vrot.lane.b32.xlu0 %v924, 16
      %v996 = vpop.permute.xlu0 %995
      %997 = vrot.lane.b32.xlu0 %v926, 16
      %v998 = vpop.permute.xlu0 %997
      %999 = vrot.lane.b32.xlu0 %v928, 16
      %v1000 = vpop.permute.xlu0 %999
      %1001 = vrot.lane.b32.xlu0 %v930, 16
      %v1002 = vpop.permute.xlu0 %1001
      %1003 = vrot.lane.b32.xlu0 %v932, 16
      %v1004 = vpop.permute.xlu0 %1003
      %1005 = vrot.lane.b32.xlu0 %v934, 16
      %v1006 = vpop.permute.xlu0 %1005
      %1007 = vrot.lane.b32.xlu0 %v936, 16
      %v1008 = vpop.permute.xlu0 %1007
      %1009 = vrot.lane.b32.xlu0 %v938, 16
      %v1010 = vpop.permute.xlu0 %1009
      %1011 = vrot.lane.b32.xlu0 %v940, 16
      %v1012 = vpop.permute.xlu0 %1011
      %1013 = vrot.lane.b32.xlu0 %v942, 16
      %v1014 = vpop.permute.xlu0 %1013
      %1015 = vrot.lane.b32.xlu0 %v944, 16
      %v1016 = vpop.permute.xlu0 %1015
      %1017 = vrot.lane.b32.xlu0 %v946, 16
      %v1018 = vpop.permute.xlu0 %1017
      %1019 = vrot.lane.b32.xlu0 %v948, 16
      %v1020 = vpop.permute.xlu0 %1019
      %1021 = vrot.lane.b32.xlu0 %v950, 16
      %v1022 = vpop.permute.xlu0 %1021
      %1023 = vrot.lane.b32.xlu0 %v952, 16
      %v1024 = vpop.permute.xlu0 %1023
      %1025 = vrot.lane.b32.xlu0 %v954, 16
      %v1026 = vpop.permute.xlu0 %1025
      %1027 = vrot.lane.b32.xlu0 %v956, 16
      %v1028 = vpop.permute.xlu0 %1027
      %1029 = vrot.lane.b32.xlu0 %v958, 16
      %v1030 = vpop.permute.xlu0 %1029
      %1031 = vrot.lane.b32.xlu0 %v960, 16
      %v1032 = vpop.permute.xlu0 %1031
      %1033 = vrot.lane.b32.xlu0 %v962, 16
      %v1034 = vpop.permute.xlu0 %1033
      %1035 = vrot.lane.b32.xlu0 %v964, 16
      %v1036 = vpop.permute.xlu0 %1035
      %1037 = vrot.lane.b32.xlu0 %v966, 16
      %v1038 = vpop.permute.xlu0 %1037
      %1039 = vrot.lane.b32.xlu0 %v968, 16
      %v1040 = vpop.permute.xlu0 %1039
      %1041 = vrot.lane.b32.xlu0 %v970, 16
      %v1042 = vpop.permute.xlu0 %1041
      %1043 = vrot.lane.b32.xlu0 %v972, 16
      %v1044 = vpop.permute.xlu0 %1043
      %1045 = vrot.lane.b32.xlu0 %v974, 16
      %v1046 = vpop.permute.xlu0 %1045
      %1047 = vrot.lane.b32.xlu0 %v976, 16
      %v1048 = vpop.permute.xlu0 %1047
      %1049 = vrot.lane.b32.xlu0 %v978, 16
      %v1050 = vpop.permute.xlu0 %1049
      %vm1088 = vcmask 1043456
      %v1089 = vrot.slane %v369, 4
      %v1090 = vrot.slane %v321, 4
      %v1091 = vsel %vm1088, %v1089, %v1090
      %v1092 = vrot.slane %v322, 4
      %v1093 = vsel %vm1088, %v1090, %v1092
      %v1094 = vrot.slane %v323, 4
      %v1095 = vsel %vm1088, %v1092, %v1094
      %v1096 = vrot.slane %v324, 4
      %v1097 = vsel %vm1088, %v1094, %v1096
      %v1098 = vrot.slane %v325, 4
      %v1099 = vsel %vm1088, %v1096, %v1098
      %v1100 = vrot.slane %v326, 4
      %v1101 = vsel %vm1088, %v1098, %v1100
      %v1102 = vrot.slane %v327, 4
      %v1103 = vsel %vm1088, %v1100, %v1102
      %v1104 = vrot.slane %v328, 4
      %v1105 = vsel %vm1088, %v1102, %v1104
      %v1106 = vrot.slane %v329, 4
      %v1107 = vsel %vm1088, %v1104, %v1106
      %v1108 = vrot.slane %v330, 4
      %v1109 = vsel %vm1088, %v1106, %v1108
      %v1110 = vrot.slane %v331, 4
      %v1111 = vsel %vm1088, %v1108, %v1110
      %v1112 = vrot.slane %v332, 4
      %v1113 = vsel %vm1088, %v1110, %v1112
      %v1114 = vrot.slane %v333, 4
      %v1115 = vsel %vm1088, %v1112, %v1114
      %v1116 = vrot.slane %v334, 4
      %v1117 = vsel %vm1088, %v1114, %v1116
      %v1118 = vrot.slane %v335, 4
      %v1119 = vsel %vm1088, %v1116, %v1118
      %v1120 = vrot.slane %v336, 4
      %v1121 = vsel %vm1088, %v1118, %v1120
      %v1122 = vrot.slane %v337, 4
      %v1123 = vsel %vm1088, %v1120, %v1122
      %v1124 = vrot.slane %v338, 4
      %v1125 = vsel %vm1088, %v1122, %v1124
      %v1126 = vrot.slane %v339, 4
      %v1127 = vsel %vm1088, %v1124, %v1126
      %v1128 = vrot.slane %v340, 4
      %v1129 = vsel %vm1088, %v1126, %v1128
      %v1130 = vrot.slane %v341, 4
      %v1131 = vsel %vm1088, %v1128, %v1130
      %v1132 = vrot.slane %v342, 4
      %v1133 = vsel %vm1088, %v1130, %v1132
      %v1134 = vrot.slane %v343, 4
      %v1135 = vsel %vm1088, %v1132, %v1134
      %v1136 = vrot.slane %v344, 4
      %v1137 = vsel %vm1088, %v1134, %v1136
      %v1138 = vrot.slane %v345, 4
      %v1139 = vsel %vm1088, %v1136, %v1138
      %v1140 = vrot.slane %v346, 4
      %v1141 = vsel %vm1088, %v1138, %v1140
      %v1142 = vrot.slane %v347, 4
      %v1143 = vsel %vm1088, %v1140, %v1142
      %v1144 = vrot.slane %v348, 4
      %v1145 = vsel %vm1088, %v1142, %v1144
      %v1146 = vrot.slane %v349, 4
      %v1147 = vsel %vm1088, %v1144, %v1146
      %v1148 = vrot.slane %v350, 4
      %v1149 = vsel %vm1088, %v1146, %v1148
      %v1150 = vrot.slane %v351, 4
      %v1151 = vsel %vm1088, %v1148, %v1150
      %v1152 = vrot.slane %v352, 4
      %v1153 = vsel %vm1088, %v1150, %v1152
      %v1154 = vrot.slane %v353, 4
      %v1155 = vsel %vm1088, %v1152, %v1154
      %v1156 = vrot.slane %v363, 4
      %v1157 = vsel %vm1088, %v1154, %v1156
      %v1158 = vrot.slane %v364, 4
      %v1159 = vsel %vm1088, %v1156, %v1158
      %v1160 = vrot.slane %v367, 4
      %v1161 = vsel %vm1088, %v1158, %v1160
      %1162 = vrot.lane.b32.xlu0 %v1091, 20
      %v1163 = vpop.permute.xlu0 %1162
      %1164 = vrot.lane.b32.xlu0 %v1093, 20
      %v1165 = vpop.permute.xlu0 %1164
      %1166 = vrot.lane.b32.xlu0 %v1095, 20
      %v1167 = vpop.permute.xlu0 %1166
      %1168 = vrot.lane.b32.xlu0 %v1097, 20
      %v1169 = vpop.permute.xlu0 %1168
      %1170 = vrot.lane.b32.xlu0 %v1099, 20
      %v1171 = vpop.permute.xlu0 %1170
      %1172 = vrot.lane.b32.xlu0 %v1101, 20
      %v1173 = vpop.permute.xlu0 %1172
      %1174 = vrot.lane.b32.xlu0 %v1103, 20
      %v1175 = vpop.permute.xlu0 %1174
      %1176 = vrot.lane.b32.xlu0 %v1105, 20
      %v1177 = vpop.permute.xlu0 %1176
      %1178 = vrot.lane.b32.xlu0 %v1107, 20
      %v1179 = vpop.permute.xlu0 %1178
      %1180 = vrot.lane.b32.xlu0 %v1109, 20
      %v1181 = vpop.permute.xlu0 %1180
      %1182 = vrot.lane.b32.xlu0 %v1111, 20
      %v1183 = vpop.permute.xlu0 %1182
      %1184 = vrot.lane.b32.xlu0 %v1113, 20
      %v1185 = vpop.permute.xlu0 %1184
      %1186 = vrot.lane.b32.xlu0 %v1115, 20
      %v1187 = vpop.permute.xlu0 %1186
      %1188 = vrot.lane.b32.xlu0 %v1117, 20
      %v1189 = vpop.permute.xlu0 %1188
      %1190 = vrot.lane.b32.xlu0 %v1119, 20
      %v1191 = vpop.permute.xlu0 %1190
      %1192 = vrot.lane.b32.xlu0 %v1121, 20
      %v1193 = vpop.permute.xlu0 %1192
      %1194 = vrot.lane.b32.xlu0 %v1123, 20
      %v1195 = vpop.permute.xlu0 %1194
      %1196 = vrot.lane.b32.xlu0 %v1125, 20
      %v1197 = vpop.permute.xlu0 %1196
      %1198 = vrot.lane.b32.xlu0 %v1127, 20
      %v1199 = vpop.permute.xlu0 %1198
      %1200 = vrot.lane.b32.xlu0 %v1129, 20
      %v1201 = vpop.permute.xlu0 %1200
      %1202 = vrot.lane.b32.xlu0 %v1131, 20
      %v1203 = vpop.permute.xlu0 %1202
      %1204 = vrot.lane.b32.xlu0 %v1133, 20
      %v1205 = vpop.permute.xlu0 %1204
      %1206 = vrot.lane.b32.xlu0 %v1135, 20
      %v1207 = vpop.permute.xlu0 %1206
      %1208 = vrot.lane.b32.xlu0 %v1137, 20
      %v1209 = vpop.permute.xlu0 %1208
      %1210 = vrot.lane.b32.xlu0 %v1139, 20
      %v1211 = vpop.permute.xlu0 %1210
      %1212 = vrot.lane.b32.xlu0 %v1141, 20
      %v1213 = vpop.permute.xlu0 %1212
      %1214 = vrot.lane.b32.xlu0 %v1143, 20
      %v1215 = vpop.permute.xlu0 %1214
      %1216 = vrot.lane.b32.xlu0 %v1145, 20
      %v1217 = vpop.permute.xlu0 %1216
      %1218 = vrot.lane.b32.xlu0 %v1147, 20
      %v1219 = vpop.permute.xlu0 %1218
      %1220 = vrot.lane.b32.xlu0 %v1149, 20
      %v1221 = vpop.permute.xlu0 %1220
      %1222 = vrot.lane.b32.xlu0 %v1151, 20
      %v1223 = vpop.permute.xlu0 %1222
      %1224 = vrot.lane.b32.xlu0 %v1153, 20
      %v1225 = vpop.permute.xlu0 %1224
      %1226 = vrot.lane.b32.xlu0 %v1155, 20
      %v1227 = vpop.permute.xlu0 %1226
      %1228 = vrot.lane.b32.xlu0 %v1157, 20
      %v1229 = vpop.permute.xlu0 %1228
      %1230 = vrot.lane.b32.xlu0 %v1159, 20
      %v1231 = vpop.permute.xlu0 %1230
      %1232 = vrot.lane.b32.xlu0 %v1161, 20
      %v1233 = vpop.permute.xlu0 %1232
      %v1274 = vrot.slane %v374, 4
      %v1275 = vsel %vm1088, %v1274, %v1094
      %v1276 = vrot.slane %v375, 4
      %v1277 = vsel %vm1088, %v1158, %v1276
      %v1278 = vrot.slane %v376, 4
      %v1279 = vsel %vm1088, %v1276, %v1278
      %v1280 = vrot.slane %v377, 4
      %v1281 = vsel %vm1088, %v1278, %v1280
      %1282 = vrot.lane.b32.xlu0 %v1275, 24
      %v1283 = vpop.permute.xlu0 %1282
      %1284 = vrot.lane.b32.xlu0 %v1097, 24
      %v1285 = vpop.permute.xlu0 %1284
      %1286 = vrot.lane.b32.xlu0 %v1099, 24
      %v1287 = vpop.permute.xlu0 %1286
      %1288 = vrot.lane.b32.xlu0 %v1101, 24
      %v1289 = vpop.permute.xlu0 %1288
      %1290 = vrot.lane.b32.xlu0 %v1103, 24
      %v1291 = vpop.permute.xlu0 %1290
      %1292 = vrot.lane.b32.xlu0 %v1105, 24
      %v1293 = vpop.permute.xlu0 %1292
      %1294 = vrot.lane.b32.xlu0 %v1107, 24
      %v1295 = vpop.permute.xlu0 %1294
      %1296 = vrot.lane.b32.xlu0 %v1109, 24
      %v1297 = vpop.permute.xlu0 %1296
      %1298 = vrot.lane.b32.xlu0 %v1111, 24
      %v1299 = vpop.permute.xlu0 %1298
      %1300 = vrot.lane.b32.xlu0 %v1113, 24
      %v1301 = vpop.permute.xlu0 %1300
      %1302 = vrot.lane.b32.xlu0 %v1115, 24
      %v1303 = vpop.permute.xlu0 %1302
      %1304 = vrot.lane.b32.xlu0 %v1117, 24
      %v1305 = vpop.permute.xlu0 %1304
      %1306 = vrot.lane.b32.xlu0 %v1119, 24
      %v1307 = vpop.permute.xlu0 %1306
      %1308 = vrot.lane.b32.xlu0 %v1121, 24
      %v1309 = vpop.permute.xlu0 %1308
      %1310 = vrot.lane.b32.xlu0 %v1123, 24
      %v1311 = vpop.permute.xlu0 %1310
      %1312 = vrot.lane.b32.xlu0 %v1125, 24
      %v1313 = vpop.permute.xlu0 %1312
      %1314 = vrot.lane.b32.xlu0 %v1127, 24
      %v1315 = vpop.permute.xlu0 %1314
      %1316 = vrot.lane.b32.xlu0 %v1129, 24
      %v1317 = vpop.permute.xlu0 %1316
      %1318 = vrot.lane.b32.xlu0 %v1131, 24
      %v1319 = vpop.permute.xlu0 %1318
      %1320 = vrot.lane.b32.xlu0 %v1133, 24
      %v1321 = vpop.permute.xlu0 %1320
      %1322 = vrot.lane.b32.xlu0 %v1135, 24
      %v1323 = vpop.permute.xlu0 %1322
      %1324 = vrot.lane.b32.xlu0 %v1137, 24
      %v1325 = vpop.permute.xlu0 %1324
      %1326 = vrot.lane.b32.xlu0 %v1139, 24
      %v1327 = vpop.permute.xlu0 %1326
      %1328 = vrot.lane.b32.xlu0 %v1141, 24
      %v1329 = vpop.permute.xlu0 %1328
      %1330 = vrot.lane.b32.xlu0 %v1143, 24
      %v1331 = vpop.permute.xlu0 %1330
      %1332 = vrot.lane.b32.xlu0 %v1145, 24
      %v1333 = vpop.permute.xlu0 %1332
      %1334 = vrot.lane.b32.xlu0 %v1147, 24
      %v1335 = vpop.permute.xlu0 %1334
      %1336 = vrot.lane.b32.xlu0 %v1149, 24
      %v1337 = vpop.permute.xlu0 %1336
      %1338 = vrot.lane.b32.xlu0 %v1151, 24
      %v1339 = vpop.permute.xlu0 %1338
      %1340 = vrot.lane.b32.xlu0 %v1153, 24
      %v1341 = vpop.permute.xlu0 %1340
      %1342 = vrot.lane.b32.xlu0 %v1155, 24
      %v1343 = vpop.permute.xlu0 %1342
      %1344 = vrot.lane.b32.xlu0 %v1157, 24
      %v1345 = vpop.permute.xlu0 %1344
      %1346 = vrot.lane.b32.xlu0 %v1159, 24
      %v1347 = vpop.permute.xlu0 %1346
      %1348 = vrot.lane.b32.xlu0 %v1277, 24
      %v1349 = vpop.permute.xlu0 %1348
      %1350 = vrot.lane.b32.xlu0 %v1279, 24
      %v1351 = vpop.permute.xlu0 %1350
      %1352 = vrot.lane.b32.xlu0 %v1281, 24
      %v1353 = vpop.permute.xlu0 %1352
      %vm1391 = vcmask 1042432
      %v1392 = vrot.slane %v374, 5
      %v1393 = vrot.slane %v323, 5
      %v1394 = vsel %vm1391, %v1392, %v1393
      %v1395 = vrot.slane %v324, 5
      %v1396 = vsel %vm1391, %v1393, %v1395
      %v1397 = vrot.slane %v325, 5
      %v1398 = vsel %vm1391, %v1395, %v1397
      %v1399 = vrot.slane %v326, 5
      %v1400 = vsel %vm1391, %v1397, %v1399
      %v1401 = vrot.slane %v327, 5
      %v1402 = vsel %vm1391, %v1399, %v1401
      %v1403 = vrot.slane %v328, 5
      %v1404 = vsel %vm1391, %v1401, %v1403
      %v1405 = vrot.slane %v329, 5
      %v1406 = vsel %vm1391, %v1403, %v1405
      %v1407 = vrot.slane %v330, 5
      %v1408 = vsel %vm1391, %v1405, %v1407
      %v1409 = vrot.slane %v331, 5
      %v1410 = vsel %vm1391, %v1407, %v1409
      %v1411 = vrot.slane %v332, 5
      %v1412 = vsel %vm1391, %v1409, %v1411
      %v1413 = vrot.slane %v333, 5
      %v1414 = vsel %vm1391, %v1411, %v1413
      %v1415 = vrot.slane %v334, 5
      %v1416 = vsel %vm1391, %v1413, %v1415
      %v1417 = vrot.slane %v335, 5
      %v1418 = vsel %vm1391, %v1415, %v1417
      %v1419 = vrot.slane %v336, 5
      %v1420 = vsel %vm1391, %v1417, %v1419
      %v1421 = vrot.slane %v337, 5
      %v1422 = vsel %vm1391, %v1419, %v1421
      %v1423 = vrot.slane %v338, 5
      %v1424 = vsel %vm1391, %v1421, %v1423
      %v1425 = vrot.slane %v339, 5
      %v1426 = vsel %vm1391, %v1423, %v1425
      %v1427 = vrot.slane %v340, 5
      %v1428 = vsel %vm1391, %v1425, %v1427
      %v1429 = vrot.slane %v341, 5
      %v1430 = vsel %vm1391, %v1427, %v1429
      %v1431 = vrot.slane %v342, 5
      %v1432 = vsel %vm1391, %v1429, %v1431
      %v1433 = vrot.slane %v343, 5
      %v1434 = vsel %vm1391, %v1431, %v1433
      %v1435 = vrot.slane %v344, 5
      %v1436 = vsel %vm1391, %v1433, %v1435
      %v1437 = vrot.slane %v345, 5
      %v1438 = vsel %vm1391, %v1435, %v1437
      %v1439 = vrot.slane %v346, 5
      %v1440 = vsel %vm1391, %v1437, %v1439
      %v1441 = vrot.slane %v347, 5
      %v1442 = vsel %vm1391, %v1439, %v1441
      %v1443 = vrot.slane %v348, 5
      %v1444 = vsel %vm1391, %v1441, %v1443
      %v1445 = vrot.slane %v349, 5
      %v1446 = vsel %vm1391, %v1443, %v1445
      %v1447 = vrot.slane %v350, 5
      %v1448 = vsel %vm1391, %v1445, %v1447
      %v1449 = vrot.slane %v351, 5
      %v1450 = vsel %vm1391, %v1447, %v1449
      %v1451 = vrot.slane %v352, 5
      %v1452 = vsel %vm1391, %v1449, %v1451
      %v1453 = vrot.slane %v353, 5
      %v1454 = vsel %vm1391, %v1451, %v1453
      %v1455 = vrot.slane %v363, 5
      %v1456 = vsel %vm1391, %v1453, %v1455
      %v1457 = vrot.slane %v364, 5
      %v1458 = vsel %vm1391, %v1455, %v1457
      %v1459 = vrot.slane %v375, 5
      %v1460 = vsel %vm1391, %v1457, %v1459
      %v1461 = vrot.slane %v376, 5
      %v1462 = vsel %vm1391, %v1459, %v1461
      %v1463 = vrot.slane %v379, 5
      %v1464 = vsel %vm1391, %v1461, %v1463
      %1465 = vrot.lane.b32.xlu0 %v1394, 28
      %v1466 = vpop.permute.xlu0 %1465
      %1467 = vrot.lane.b32.xlu0 %v1396, 28
      %v1468 = vpop.permute.xlu0 %1467
      %1469 = vrot.lane.b32.xlu0 %v1398, 28
      %v1470 = vpop.permute.xlu0 %1469
      %1471 = vrot.lane.b32.xlu0 %v1400, 28
      %v1472 = vpop.permute.xlu0 %1471
      %1473 = vrot.lane.b32.xlu0 %v1402, 28
      %v1474 = vpop.permute.xlu0 %1473
      %1475 = vrot.lane.b32.xlu0 %v1404, 28
      %v1476 = vpop.permute.xlu0 %1475
      %1477 = vrot.lane.b32.xlu0 %v1406, 28
      %v1478 = vpop.permute.xlu0 %1477
      %1479 = vrot.lane.b32.xlu0 %v1408, 28
      %v1480 = vpop.permute.xlu0 %1479
      %1481 = vrot.lane.b32.xlu0 %v1410, 28
      %v1482 = vpop.permute.xlu0 %1481
      %1483 = vrot.lane.b32.xlu0 %v1412, 28
      %v1484 = vpop.permute.xlu0 %1483
      %1485 = vrot.lane.b32.xlu0 %v1414, 28
      %v1486 = vpop.permute.xlu0 %1485
      %1487 = vrot.lane.b32.xlu0 %v1416, 28
      %v1488 = vpop.permute.xlu0 %1487
      %1489 = vrot.lane.b32.xlu0 %v1418, 28
      %v1490 = vpop.permute.xlu0 %1489
      %1491 = vrot.lane.b32.xlu0 %v1420, 28
      %v1492 = vpop.permute.xlu0 %1491
      %1493 = vrot.lane.b32.xlu0 %v1422, 28
      %v1494 = vpop.permute.xlu0 %1493
      %1495 = vrot.lane.b32.xlu0 %v1424, 28
      %v1496 = vpop.permute.xlu0 %1495
      %1497 = vrot.lane.b32.xlu0 %v1426, 28
      %v1498 = vpop.permute.xlu0 %1497
      %1499 = vrot.lane.b32.xlu0 %v1428, 28
      %v1500 = vpop.permute.xlu0 %1499
      %1501 = vrot.lane.b32.xlu0 %v1430, 28
      %v1502 = vpop.permute.xlu0 %1501
      %1503 = vrot.lane.b32.xlu0 %v1432, 28
      %v1504 = vpop.permute.xlu0 %1503
      %1505 = vrot.lane.b32.xlu0 %v1434, 28
      %v1506 = vpop.permute.xlu0 %1505
      %1507 = vrot.lane.b32.xlu0 %v1436, 28
      %v1508 = vpop.permute.xlu0 %1507
      %1509 = vrot.lane.b32.xlu0 %v1438, 28
      %v1510 = vpop.permute.xlu0 %1509
      %1511 = vrot.lane.b32.xlu0 %v1440, 28
      %v1512 = vpop.permute.xlu0 %1511
      %1513 = vrot.lane.b32.xlu0 %v1442, 28
      %v1514 = vpop.permute.xlu0 %1513
      %1515 = vrot.lane.b32.xlu0 %v1444, 28
      %v1516 = vpop.permute.xlu0 %1515
      %1517 = vrot.lane.b32.xlu0 %v1446, 28
      %v1518 = vpop.permute.xlu0 %1517
      %1519 = vrot.lane.b32.xlu0 %v1448, 28
      %v1520 = vpop.permute.xlu0 %1519
      %1521 = vrot.lane.b32.xlu0 %v1450, 28
      %v1522 = vpop.permute.xlu0 %1521
      %1523 = vrot.lane.b32.xlu0 %v1452, 28
      %v1524 = vpop.permute.xlu0 %1523
      %1525 = vrot.lane.b32.xlu0 %v1454, 28
      %v1526 = vpop.permute.xlu0 %1525
      %1527 = vrot.lane.b32.xlu0 %v1456, 28
      %v1528 = vpop.permute.xlu0 %1527
      %1529 = vrot.lane.b32.xlu0 %v1458, 28
      %v1530 = vpop.permute.xlu0 %1529
      %1531 = vrot.lane.b32.xlu0 %v1460, 28
      %v1532 = vpop.permute.xlu0 %1531
      %1533 = vrot.lane.b32.xlu0 %v1462, 28
      %v1534 = vpop.permute.xlu0 %1533
      %1535 = vrot.lane.b32.xlu0 %v1464, 28
      %v1536 = vpop.permute.xlu0 %1535
      %vm1574 = vcmask 1041408
      %v1575 = vrot.slane %v381, 6
      %v1576 = vrot.slane %v323, 6
      %v1577 = vsel %vm1574, %v1575, %v1576
      %v1578 = vrot.slane %v324, 6
      %v1579 = vsel %vm1574, %v1576, %v1578
      %v1580 = vrot.slane %v325, 6
      %v1581 = vsel %vm1574, %v1578, %v1580
      %v1582 = vrot.slane %v326, 6
      %v1583 = vsel %vm1574, %v1580, %v1582
      %v1584 = vrot.slane %v327, 6
      %v1585 = vsel %vm1574, %v1582, %v1584
      %v1586 = vrot.slane %v328, 6
      %v1587 = vsel %vm1574, %v1584, %v1586
      %v1588 = vrot.slane %v329, 6
      %v1589 = vsel %vm1574, %v1586, %v1588
      %v1590 = vrot.slane %v330, 6
      %v1591 = vsel %vm1574, %v1588, %v1590
      %v1592 = vrot.slane %v331, 6
      %v1593 = vsel %vm1574, %v1590, %v1592
      %v1594 = vrot.slane %v332, 6
      %v1595 = vsel %vm1574, %v1592, %v1594
      %v1596 = vrot.slane %v333, 6
      %v1597 = vsel %vm1574, %v1594, %v1596
      %v1598 = vrot.slane %v334, 6
      %v1599 = vsel %vm1574, %v1596, %v1598
      %v1600 = vrot.slane %v335, 6
      %v1601 = vsel %vm1574, %v1598, %v1600
      %v1602 = vrot.slane %v336, 6
      %v1603 = vsel %vm1574, %v1600, %v1602
      %v1604 = vrot.slane %v337, 6
      %v1605 = vsel %vm1574, %v1602, %v1604
      %v1606 = vrot.slane %v338, 6
      %v1607 = vsel %vm1574, %v1604, %v1606
      %v1608 = vrot.slane %v339, 6
      %v1609 = vsel %vm1574, %v1606, %v1608
      %v1610 = vrot.slane %v340, 6
      %v1611 = vsel %vm1574, %v1608, %v1610
      %v1612 = vrot.slane %v341, 6
      %v1613 = vsel %vm1574, %v1610, %v1612
      %v1614 = vrot.slane %v342, 6
      %v1615 = vsel %vm1574, %v1612, %v1614
      %v1616 = vrot.slane %v343, 6
      %v1617 = vsel %vm1574, %v1614, %v1616
      %v1618 = vrot.slane %v344, 6
      %v1619 = vsel %vm1574, %v1616, %v1618
      %v1620 = vrot.slane %v345, 6
      %v1621 = vsel %vm1574, %v1618, %v1620
      %v1622 = vrot.slane %v346, 6
      %v1623 = vsel %vm1574, %v1620, %v1622
      %v1624 = vrot.slane %v347, 6
      %v1625 = vsel %vm1574, %v1622, %v1624
      %v1626 = vrot.slane %v348, 6
      %v1627 = vsel %vm1574, %v1624, %v1626
      %v1628 = vrot.slane %v349, 6
      %v1629 = vsel %vm1574, %v1626, %v1628
      %v1630 = vrot.slane %v350, 6
      %v1631 = vsel %vm1574, %v1628, %v1630
      %v1632 = vrot.slane %v351, 6
      %v1633 = vsel %vm1574, %v1630, %v1632
      %v1634 = vrot.slane %v352, 6
      %v1635 = vsel %vm1574, %v1632, %v1634
      %v1636 = vrot.slane %v353, 6
      %v1637 = vsel %vm1574, %v1634, %v1636
      %v1638 = vrot.slane %v363, 6
      %v1639 = vsel %vm1574, %v1636, %v1638
      %v1640 = vrot.slane %v364, 6
      %v1641 = vsel %vm1574, %v1638, %v1640
      %v1642 = vrot.slane %v375, 6
      %v1643 = vsel %vm1574, %v1640, %v1642
      %v1644 = vrot.slane %v376, 6
      %v1645 = vsel %vm1574, %v1642, %v1644
      %v1646 = vrot.slane %v379, 6
      %v1647 = vsel %vm1574, %v1644, %v1646
      %1648 = vrot.lane.b32.xlu0 %v1577, 32
      %v1649 = vpop.permute.xlu0 %1648
      %1650 = vrot.lane.b32.xlu0 %v1579, 32
      %v1651 = vpop.permute.xlu0 %1650
      %1652 = vrot.lane.b32.xlu0 %v1581, 32
      %v1653 = vpop.permute.xlu0 %1652
      %1654 = vrot.lane.b32.xlu0 %v1583, 32
      %v1655 = vpop.permute.xlu0 %1654
      %1656 = vrot.lane.b32.xlu0 %v1585, 32
      %v1657 = vpop.permute.xlu0 %1656
      %1658 = vrot.lane.b32.xlu0 %v1587, 32
      %v1659 = vpop.permute.xlu0 %1658
      %1660 = vrot.lane.b32.xlu0 %v1589, 32
      %v1661 = vpop.permute.xlu0 %1660
      %1662 = vrot.lane.b32.xlu0 %v1591, 32
      %v1663 = vpop.permute.xlu0 %1662
      %1664 = vrot.lane.b32.xlu0 %v1593, 32
      %v1665 = vpop.permute.xlu0 %1664
      %1666 = vrot.lane.b32.xlu0 %v1595, 32
      %v1667 = vpop.permute.xlu0 %1666
      %1668 = vrot.lane.b32.xlu0 %v1597, 32
      %v1669 = vpop.permute.xlu0 %1668
      %1670 = vrot.lane.b32.xlu0 %v1599, 32
      %v1671 = vpop.permute.xlu0 %1670
      %1672 = vrot.lane.b32.xlu0 %v1601, 32
      %v1673 = vpop.permute.xlu0 %1672
      %1674 = vrot.lane.b32.xlu0 %v1603, 32
      %v1675 = vpop.permute.xlu0 %1674
      %1676 = vrot.lane.b32.xlu0 %v1605, 32
      %v1677 = vpop.permute.xlu0 %1676
      %1678 = vrot.lane.b32.xlu0 %v1607, 32
      %v1679 = vpop.permute.xlu0 %1678
      %1680 = vrot.lane.b32.xlu0 %v1609, 32
      %v1681 = vpop.permute.xlu0 %1680
      %1682 = vrot.lane.b32.xlu0 %v1611, 32
      %v1683 = vpop.permute.xlu0 %1682
      %1684 = vrot.lane.b32.xlu0 %v1613, 32
      %v1685 = vpop.permute.xlu0 %1684
      %1686 = vrot.lane.b32.xlu0 %v1615, 32
      %v1687 = vpop.permute.xlu0 %1686
      %1688 = vrot.lane.b32.xlu0 %v1617, 32
      %v1689 = vpop.permute.xlu0 %1688
      %1690 = vrot.lane.b32.xlu0 %v1619, 32
      %v1691 = vpop.permute.xlu0 %1690
      %1692 = vrot.lane.b32.xlu0 %v1621, 32
      %v1693 = vpop.permute.xlu0 %1692
      %1694 = vrot.lane.b32.xlu0 %v1623, 32
      %v1695 = vpop.permute.xlu0 %1694
      %1696 = vrot.lane.b32.xlu0 %v1625, 32
      %v1697 = vpop.permute.xlu0 %1696
      %1698 = vrot.lane.b32.xlu0 %v1627, 32
      %v1699 = vpop.permute.xlu0 %1698
      %1700 = vrot.lane.b32.xlu0 %v1629, 32
      %v1701 = vpop.permute.xlu0 %1700
      %1702 = vrot.lane.b32.xlu0 %v1631, 32
      %v1703 = vpop.permute.xlu0 %1702
      %1704 = vrot.lane.b32.xlu0 %v1633, 32
      %v1705 = vpop.permute.xlu0 %1704
      %1706 = vrot.lane.b32.xlu0 %v1635, 32
      %v1707 = vpop.permute.xlu0 %1706
      %1708 = vrot.lane.b32.xlu0 %v1637, 32
      %v1709 = vpop.permute.xlu0 %1708
      %1710 = vrot.lane.b32.xlu0 %v1639, 32
      %v1711 = vpop.permute.xlu0 %1710
      %1712 = vrot.lane.b32.xlu0 %v1641, 32
      %v1713 = vpop.permute.xlu0 %1712
      %1714 = vrot.lane.b32.xlu0 %v1643, 32
      %v1715 = vpop.permute.xlu0 %1714
      %1716 = vrot.lane.b32.xlu0 %v1645, 32
      %v1717 = vpop.permute.xlu0 %1716
      %1718 = vrot.lane.b32.xlu0 %v1647, 32
      %v1719 = vpop.permute.xlu0 %1718
      %vm1756 = vcmask 31744
      %v1757 = vsel %vm1756, %v318, %v494
      %v1758 = vsel %vm1756, %v319, %v496
      %v1759 = vsel %vm1756, %v320, %v498
      %v1760 = vsel %vm1756, %v321, %v500
      %v1761 = vsel %vm1756, %v322, %v502
      %v1762 = vsel %vm1756, %v323, %v504
      %v1763 = vsel %vm1756, %v324, %v506
      %v1764 = vsel %vm1756, %v325, %v508
      %v1765 = vsel %vm1756, %v326, %v510
      %v1766 = vsel %vm1756, %v327, %v512
      %v1767 = vsel %vm1756, %v328, %v514
      %v1768 = vsel %vm1756, %v329, %v516
      %v1769 = vsel %vm1756, %v330, %v518
      %v1770 = vsel %vm1756, %v331, %v520
      %v1771 = vsel %vm1756, %v332, %v522
      %v1772 = vsel %vm1756, %v333, %v524
      %v1773 = vsel %vm1756, %v334, %v526
      %v1774 = vsel %vm1756, %v335, %v528
      %v1775 = vsel %vm1756, %v336, %v530
      %v1776 = vsel %vm1756, %v337, %v532
      %v1777 = vsel %vm1756, %v338, %v534
      %v1778 = vsel %vm1756, %v339, %v536
      %v1779 = vsel %vm1756, %v340, %v538
      %v1780 = vsel %vm1756, %v341, %v540
      %v1781 = vsel %vm1756, %v342, %v542
      %v1782 = vsel %vm1756, %v343, %v544
      %v1783 = vsel %vm1756, %v344, %v546
      %v1784 = vsel %vm1756, %v345, %v548
      %v1785 = vsel %vm1756, %v346, %v550
      %v1786 = vsel %vm1756, %v347, %v552
      %v1787 = vsel %vm1756, %v348, %v554
      %v1788 = vsel %vm1756, %v349, %v556
      %v1789 = vsel %vm1756, %v350, %v558
      %v1790 = vsel %vm1756, %v351, %v560
      %v1791 = vsel %vm1756, %v352, %v562
      %v1792 = vsel %vm1756, %v353, %v564
      %vm1793 = vcmask 64512
      %v1794 = vsel %vm1793, %v1757, %v677
      %v1795 = vsel %vm1793, %v1758, %v679
      %v1796 = vsel %vm1793, %v1759, %v681
      %v1797 = vsel %vm1793, %v1760, %v683
      %v1798 = vsel %vm1793, %v1761, %v685
      %v1799 = vsel %vm1793, %v1762, %v687
      %v1800 = vsel %vm1793, %v1763, %v689
      %v1801 = vsel %vm1793, %v1764, %v691
      %v1802 = vsel %vm1793, %v1765, %v693
      %v1803 = vsel %vm1793, %v1766, %v695
      %v1804 = vsel %vm1793, %v1767, %v697
      %v1805 = vsel %vm1793, %v1768, %v699
      %v1806 = vsel %vm1793, %v1769, %v701
      %v1807 = vsel %vm1793, %v1770, %v703
      %v1808 = vsel %vm1793, %v1771, %v705
      %v1809 = vsel %vm1793, %v1772, %v707
      %v1810 = vsel %vm1793, %v1773, %v709
      %v1811 = vsel %vm1793, %v1774, %v711
      %v1812 = vsel %vm1793, %v1775, %v713
      %v1813 = vsel %vm1793, %v1776, %v715
      %v1814 = vsel %vm1793, %v1777, %v717
      %v1815 = vsel %vm1793, %v1778, %v719
      %v1816 = vsel %vm1793, %v1779, %v721
      %v1817 = vsel %vm1793, %v1780, %v723
      %v1818 = vsel %vm1793, %v1781, %v725
      %v1819 = vsel %vm1793, %v1782, %v727
      %v1820 = vsel %vm1793, %v1783, %v729
      %v1821 = vsel %vm1793, %v1784, %v731
      %v1822 = vsel %vm1793, %v1785, %v733
      %v1823 = vsel %vm1793, %v1786, %v735
      %v1824 = vsel %vm1793, %v1787, %v737
      %v1825 = vsel %vm1793, %v1788, %v739
      %v1826 = vsel %vm1793, %v1789, %v741
      %v1827 = vsel %vm1793, %v1790, %v743
      %v1828 = vsel %vm1793, %v1791, %v745
      %v1829 = vsel %vm1793, %v1792, %v747
      %vm1830 = vcmask 97280
      %v1831 = vsel %vm1830, %v1794, %v797
      %v1832 = vsel %vm1830, %v1795, %v799
      %v1833 = vsel %vm1830, %v1796, %v801
      %v1834 = vsel %vm1830, %v1797, %v803
      %v1835 = vsel %vm1830, %v1798, %v805
      %v1836 = vsel %vm1830, %v1799, %v807
      %v1837 = vsel %vm1830, %v1800, %v809
      %v1838 = vsel %vm1830, %v1801, %v811
      %v1839 = vsel %vm1830, %v1802, %v813
      %v1840 = vsel %vm1830, %v1803, %v815
      %v1841 = vsel %vm1830, %v1804, %v817
      %v1842 = vsel %vm1830, %v1805, %v819
      %v1843 = vsel %vm1830, %v1806, %v821
      %v1844 = vsel %vm1830, %v1807, %v823
      %v1845 = vsel %vm1830, %v1808, %v825
      %v1846 = vsel %vm1830, %v1809, %v827
      %v1847 = vsel %vm1830, %v1810, %v829
      %v1848 = vsel %vm1830, %v1811, %v831
      %v1849 = vsel %vm1830, %v1812, %v833
      %v1850 = vsel %vm1830, %v1813, %v835
      %v1851 = vsel %vm1830, %v1814, %v837
      %v1852 = vsel %vm1830, %v1815, %v839
      %v1853 = vsel %vm1830, %v1816, %v841
      %v1854 = vsel %vm1830, %v1817, %v843
      %v1855 = vsel %vm1830, %v1818, %v845
      %v1856 = vsel %vm1830, %v1819, %v847
      %v1857 = vsel %vm1830, %v1820, %v849
      %v1858 = vsel %vm1830, %v1821, %v851
      %v1859 = vsel %vm1830, %v1822, %v853
      %v1860 = vsel %vm1830, %v1823, %v855
      %v1861 = vsel %vm1830, %v1824, %v857
      %v1862 = vsel %vm1830, %v1825, %v859
      %v1863 = vsel %vm1830, %v1826, %v861
      %v1864 = vsel %vm1830, %v1827, %v863
      %v1865 = vsel %vm1830, %v1828, %v865
      %v1866 = vsel %vm1830, %v1829, %v867
      %vm1867 = vcmask 130048
      %v1868 = vsel %vm1867, %v1831, %v980
      %v1869 = vsel %vm1867, %v1832, %v982
      %v1870 = vsel %vm1867, %v1833, %v984
      %v1871 = vsel %vm1867, %v1834, %v986
      %v1872 = vsel %vm1867, %v1835, %v988
      %v1873 = vsel %vm1867, %v1836, %v990
      %v1874 = vsel %vm1867, %v1837, %v992
      %v1875 = vsel %vm1867, %v1838, %v994
      %v1876 = vsel %vm1867, %v1839, %v996
      %v1877 = vsel %vm1867, %v1840, %v998
      %v1878 = vsel %vm1867, %v1841, %v1000
      %v1879 = vsel %vm1867, %v1842, %v1002
      %v1880 = vsel %vm1867, %v1843, %v1004
      %v1881 = vsel %vm1867, %v1844, %v1006
      %v1882 = vsel %vm1867, %v1845, %v1008
      %v1883 = vsel %vm1867, %v1846, %v1010
      %v1884 = vsel %vm1867, %v1847, %v1012
      %v1885 = vsel %vm1867, %v1848, %v1014
      %v1886 = vsel %vm1867, %v1849, %v1016
      %v1887 = vsel %vm1867, %v1850, %v1018
      %v1888 = vsel %vm1867, %v1851, %v1020
      %v1889 = vsel %vm1867, %v1852, %v1022
      %v1890 = vsel %vm1867, %v1853, %v1024
      %v1891 = vsel %vm1867, %v1854, %v1026
      %v1892 = vsel %vm1867, %v1855, %v1028
      %v1893 = vsel %vm1867, %v1856, %v1030
      %v1894 = vsel %vm1867, %v1857, %v1032
      %v1895 = vsel %vm1867, %v1858, %v1034
      %v1896 = vsel %vm1867, %v1859, %v1036
      %v1897 = vsel %vm1867, %v1860, %v1038
      %v1898 = vsel %vm1867, %v1861, %v1040
      %v1899 = vsel %vm1867, %v1862, %v1042
      %v1900 = vsel %vm1867, %v1863, %v1044
      %v1901 = vsel %vm1867, %v1864, %v1046
      %v1902 = vsel %vm1867, %v1865, %v1048
      %v1903 = vsel %vm1867, %v1866, %v1050
      %vm1904 = vcmask 162816
      %v1905 = vsel %vm1904, %v1868, %v1163
      %v1906 = vsel %vm1904, %v1869, %v1165
      %v1907 = vsel %vm1904, %v1870, %v1167
      %v1908 = vsel %vm1904, %v1871, %v1169
      %v1909 = vsel %vm1904, %v1872, %v1171
      %v1910 = vsel %vm1904, %v1873, %v1173
      %v1911 = vsel %vm1904, %v1874, %v1175
      %v1912 = vsel %vm1904, %v1875, %v1177
      %v1913 = vsel %vm1904, %v1876, %v1179
      %v1914 = vsel %vm1904, %v1877, %v1181
      %v1915 = vsel %vm1904, %v1878, %v1183
      %v1916 = vsel %vm1904, %v1879, %v1185
      %v1917 = vsel %vm1904, %v1880, %v1187
      %v1918 = vsel %vm1904, %v1881, %v1189
      %v1919 = vsel %vm1904, %v1882, %v1191
      %v1920 = vsel %vm1904, %v1883, %v1193
      %v1921 = vsel %vm1904, %v1884, %v1195
      %v1922 = vsel %vm1904, %v1885, %v1197
      %v1923 = vsel %vm1904, %v1886, %v1199
      %v1924 = vsel %vm1904, %v1887, %v1201
      %v1925 = vsel %vm1904, %v1888, %v1203
      %v1926 = vsel %vm1904, %v1889, %v1205
      %v1927 = vsel %vm1904, %v1890, %v1207
      %v1928 = vsel %vm1904, %v1891, %v1209
      %v1929 = vsel %vm1904, %v1892, %v1211
      %v1930 = vsel %vm1904, %v1893, %v1213
      %v1931 = vsel %vm1904, %v1894, %v1215
      %v1932 = vsel %vm1904, %v1895, %v1217
      %v1933 = vsel %vm1904, %v1896, %v1219
      %v1934 = vsel %vm1904, %v1897, %v1221
      %v1935 = vsel %vm1904, %v1898, %v1223
      %v1936 = vsel %vm1904, %v1899, %v1225
      %v1937 = vsel %vm1904, %v1900, %v1227
      %v1938 = vsel %vm1904, %v1901, %v1229
      %v1939 = vsel %vm1904, %v1902, %v1231
      %v1940 = vsel %vm1904, %v1903, %v1233
      %vm1941 = vcmask 195584
      %v1942 = vsel %vm1941, %v1905, %v1283
      %v1943 = vsel %vm1941, %v1906, %v1285
      %v1944 = vsel %vm1941, %v1907, %v1287
      %v1945 = vsel %vm1941, %v1908, %v1289
      %v1946 = vsel %vm1941, %v1909, %v1291
      %v1947 = vsel %vm1941, %v1910, %v1293
      %v1948 = vsel %vm1941, %v1911, %v1295
      %v1949 = vsel %vm1941, %v1912, %v1297
      %v1950 = vsel %vm1941, %v1913, %v1299
      %v1951 = vsel %vm1941, %v1914, %v1301
      %v1952 = vsel %vm1941, %v1915, %v1303
      %v1953 = vsel %vm1941, %v1916, %v1305
      %v1954 = vsel %vm1941, %v1917, %v1307
      %v1955 = vsel %vm1941, %v1918, %v1309
      %v1956 = vsel %vm1941, %v1919, %v1311
      %v1957 = vsel %vm1941, %v1920, %v1313
      %v1958 = vsel %vm1941, %v1921, %v1315
      %v1959 = vsel %vm1941, %v1922, %v1317
      %v1960 = vsel %vm1941, %v1923, %v1319
      %v1961 = vsel %vm1941, %v1924, %v1321
      %v1962 = vsel %vm1941, %v1925, %v1323
      %v1963 = vsel %vm1941, %v1926, %v1325
      %v1964 = vsel %vm1941, %v1927, %v1327
      %v1965 = vsel %vm1941, %v1928, %v1329
      %v1966 = vsel %vm1941, %v1929, %v1331
      %v1967 = vsel %vm1941, %v1930, %v1333
      %v1968 = vsel %vm1941, %v1931, %v1335
      %v1969 = vsel %vm1941, %v1932, %v1337
      %v1970 = vsel %vm1941, %v1933, %v1339
      %v1971 = vsel %vm1941, %v1934, %v1341
      %v1972 = vsel %vm1941, %v1935, %v1343
      %v1973 = vsel %vm1941, %v1936, %v1345
      %v1974 = vsel %vm1941, %v1937, %v1347
      %v1975 = vsel %vm1941, %v1938, %v1349
      %v1976 = vsel %vm1941, %v1939, %v1351
      %v1977 = vsel %vm1941, %v1940, %v1353
      %vm1978 = vcmask 228352
      %v1979 = vsel %vm1978, %v1942, %v1466
      %v1980 = vsel %vm1978, %v1943, %v1468
      %v1981 = vsel %vm1978, %v1944, %v1470
      %v1982 = vsel %vm1978, %v1945, %v1472
      %v1983 = vsel %vm1978, %v1946, %v1474
      %v1984 = vsel %vm1978, %v1947, %v1476
      %v1985 = vsel %vm1978, %v1948, %v1478
      %v1986 = vsel %vm1978, %v1949, %v1480
      %v1987 = vsel %vm1978, %v1950, %v1482
      %v1988 = vsel %vm1978, %v1951, %v1484
      %v1989 = vsel %vm1978, %v1952, %v1486
      %v1990 = vsel %vm1978, %v1953, %v1488
      %v1991 = vsel %vm1978, %v1954, %v1490
      %v1992 = vsel %vm1978, %v1955, %v1492
      %v1993 = vsel %vm1978, %v1956, %v1494
      %v1994 = vsel %vm1978, %v1957, %v1496
      %v1995 = vsel %vm1978, %v1958, %v1498
      %v1996 = vsel %vm1978, %v1959, %v1500
      %v1997 = vsel %vm1978, %v1960, %v1502
      %v1998 = vsel %vm1978, %v1961, %v1504
      %v1999 = vsel %vm1978, %v1962, %v1506
      %v2000 = vsel %vm1978, %v1963, %v1508
      %v2001 = vsel %vm1978, %v1964, %v1510
      %v2002 = vsel %vm1978, %v1965, %v1512
      %v2003 = vsel %vm1978, %v1966, %v1514
      %v2004 = vsel %vm1978, %v1967, %v1516
      %v2005 = vsel %vm1978, %v1968, %v1518
      %v2006 = vsel %vm1978, %v1969, %v1520
      %v2007 = vsel %vm1978, %v1970, %v1522
      %v2008 = vsel %vm1978, %v1971, %v1524
      %v2009 = vsel %vm1978, %v1972, %v1526
      %v2010 = vsel %vm1978, %v1973, %v1528
      %v2011 = vsel %vm1978, %v1974, %v1530
      %v2012 = vsel %vm1978, %v1975, %v1532
      %v2013 = vsel %vm1978, %v1976, %v1534
      %v2014 = vsel %vm1978, %v1977, %v1536
      %vm2015 = vcmask 261120
      %v2016 = vsel %vm2015, %v1979, %v1649
      %v2017 = vsel %vm2015, %v1980, %v1651
      %v2018 = vsel %vm2015, %v1981, %v1653
      %v2019 = vsel %vm2015, %v1982, %v1655
      %v2020 = vsel %vm2015, %v1983, %v1657
      %v2021 = vsel %vm2015, %v1984, %v1659
      %v2022 = vsel %vm2015, %v1985, %v1661
      %v2023 = vsel %vm2015, %v1986, %v1663
      %v2024 = vsel %vm2015, %v1987, %v1665
      %v2025 = vsel %vm2015, %v1988, %v1667
      %v2026 = vsel %vm2015, %v1989, %v1669
      %v2027 = vsel %vm2015, %v1990, %v1671
      %v2028 = vsel %vm2015, %v1991, %v1673
      %v2029 = vsel %vm2015, %v1992, %v1675
      %v2030 = vsel %vm2015, %v1993, %v1677
      %v2031 = vsel %vm2015, %v1994, %v1679
      %v2032 = vsel %vm2015, %v1995, %v1681
      %v2033 = vsel %vm2015, %v1996, %v1683
      %v2034 = vsel %vm2015, %v1997, %v1685
      %v2035 = vsel %vm2015, %v1998, %v1687
      %v2036 = vsel %vm2015, %v1999, %v1689
      %v2037 = vsel %vm2015, %v2000, %v1691
      %v2038 = vsel %vm2015, %v2001, %v1693
      %v2039 = vsel %vm2015, %v2002, %v1695
      %v2040 = vsel %vm2015, %v2003, %v1697
      %v2041 = vsel %vm2015, %v2004, %v1699
      %v2042 = vsel %vm2015, %v2005, %v1701
      %v2043 = vsel %vm2015, %v2006, %v1703
      %v2044 = vsel %vm2015, %v2007, %v1705
      %v2045 = vsel %vm2015, %v2008, %v1707
      %v2046 = vsel %vm2015, %v2009, %v1709
      %v2047 = vsel %vm2015, %v2010, %v1711
      %v2048 = vsel %vm2015, %v2011, %v1713
      %v2049 = vsel %vm2015, %v2012, %v1715
      %v2050 = vsel %vm2015, %v2013, %v1717
      %v2051 = vsel %vm2015, %v2014, %v1719
      %v2052 = vpack.c.bf16 %v2017, %v2016
      %v2053 = vpack.c.bf16 %v2019, %v2018
      %v2054 = vpack.c.bf16 %v2021, %v2020
      %v2055 = vpack.c.bf16 %v2023, %v2022
      %v2056 = vpack.c.bf16 %v2025, %v2024
      %v2057 = vpack.c.bf16 %v2027, %v2026
      %v2058 = vpack.c.bf16 %v2029, %v2028
      %v2059 = vpack.c.bf16 %v2031, %v2030
      %v2060 = vpack.c.bf16 %v2033, %v2032
      %v2061 = vpack.c.bf16 %v2035, %v2034
      %v2062 = vpack.c.bf16 %v2037, %v2036
      %v2063 = vpack.c.bf16 %v2039, %v2038
      %v2064 = vpack.c.bf16 %v2041, %v2040
      %v2065 = vpack.c.bf16 %v2043, %v2042
      %v2066 = vpack.c.bf16 %v2045, %v2044
      %v2067 = vpack.c.bf16 %v2047, %v2046
      %v2068 = vpack.c.bf16 %v2049, %v2048
      %v2069 = vpack.c.bf16 %v2051, %v2050
      %v2070 = vld [vmem:[%s1] sm:$0xf]
      %v2071 = vld [vmem:[%s1 + $0x4] sm:$0xf]
      %v2072 = vld [vmem:[%s1 + $0x8] sm:$0xf]
      %v2073 = vld [vmem:[%s1 + $0xc] sm:$0xf]
      %v2074 = vld [vmem:[%s1 + $0x10] sm:$0x3]
      %v2075 = vld [vmem:[%s2] sm:$0x1]
      %v2077 = vlaneseq
      %v2078 = vshrl.u32 %v2077, 7
      %v2079 = vsub.s32 0, %v2078
      %v2080 = vrot.slane %v2075, %v2079
      %v2087 = vunpack.c.l.b16 %v2070
      %v2088 = vunpack.c.l.b16 %v2071
      %v2089 = vunpack.c.l.b16 %v2072
      %v2090 = vunpack.c.l.b16 %v2073
      %v2091 = vunpack.c.l.b16 %v2074
      %v2092 = vpack.c.b16 %v2088, %v2087
      %v2093 = vpack.c.b16 %v2090, %v2089
      %v2094 = vpack.c.b16 %v2091, %v2091
      %vm2097 = vcmask 293888
      %v2099 = vsel %vm2097, %v2052, 0
      %v2102 = vsel %vm2097, %v2053, 0
      %v2105 = vsel %vm2097, %v2054, 0
      %v2108 = vsel %vm2097, %v2055, 0
      %v2111 = vsel %vm2097, %v2056, 0
      %v2114 = vsel %vm2097, %v2057, 0
      %v2117 = vsel %vm2097, %v2058, 0
      %v2120 = vsel %vm2097, %v2059, 0
      %v2123 = vsel %vm2097, %v2060, 0
      %v2126 = vsel %vm2097, %v2061, 0
      %v2129 = vsel %vm2097, %v2062, 0
      %v2132 = vsel %vm2097, %v2063, 0
      %v2135 = vsel %vm2097, %v2064, 0
      %v2138 = vsel %vm2097, %v2065, 0
      %v2141 = vsel %vm2097, %v2066, 0
      %v2144 = vsel %vm2097, %v2067, 0
      %v2147 = vsel %vm2097, %v2068, 0
      %v2150 = vsel %vm2097, %v2069, 0
      %v2153 = vsel %vm1574, %v2094, 0
      %2155 = vmatprep.subr.bf16.mxu0 0
      %2156 = vmatpush1.bf16.msra.mxu0 %v2092
      %2157 = vmatprep.subr.bf16.mxu0 0
      %2158 = vmatpush1.bf16.msra.mxu0 %v2093
      %2159 = vmatprep.subr.bf16.mxu0 0
      %2160 = vmatpush1.bf16.msra.mxu0 %v2153
      %2161 = vmatprep.subr.bf16.mxu0 0
      %2162 = vmatpush1.bf16.msra.mxu0 0
      %2163 = vmatprep.subr.bf16.mxu0 0
      %2164 = vmatpush1.bf16.msra.mxu0 0
      %2165 = vmatprep.subr.bf16.mxu0 0
      %2166 = vmatpush1.bf16.msra.mxu0 0
      %2167 = vmatprep.subr.bf16.mxu0 0
      %2168 = vmatpush1.bf16.msra.mxu0 0
      %2169 = vmatprep.subr.bf16.mxu0 0
      %2170 = vmatpush1.bf16.msra.mxu0 0
      %2171 = vmatprep.subr.bf16.mxu0 0
      %2172 = vmatpush1.bf16.msra.mxu0 0
      %2173 = vmatprep.subr.bf16.mxu0 0
      %2174 = vmatpush1.bf16.msra.mxu0 0
      %2175 = vmatprep.subr.bf16.mxu0 0
      %2176 = vmatpush1.bf16.msra.mxu0 0
      %2177 = vmatprep.subr.bf16.mxu0 0
      %2178 = vmatpush1.bf16.msra.mxu0 0
      %2179 = vmatprep.subr.bf16.mxu0 0
      %2180 = vmatpush1.bf16.msra.mxu0 0
      %2181 = vmatprep.subr.bf16.mxu0 0
      %2182 = vmatpush1.bf16.msra.mxu0 0
      %2183 = vmatprep.subr.bf16.mxu0 0
      %2184 = vmatpush1.bf16.msra.mxu0 0
      %2185 = vmatprep.subr.bf16.mxu0 0
      %2186 = vmatpush1.bf16.msra.mxu0 0
      %2187 = vmatprep.mubr.bf16.mxu0 0
      %2188 = vmatmul.mubr.bf16.gmra.mrb[0].mxu0 %v2099
      %v2189 = vpop.f32.mrb[0].mxu0
      %v2190 = vadd.f32 %v2080, %v2189
      %v2191 = vpop.f32.mrb[0].mxu0
      %v2192 = vpop.f32.mrb[0].mxu0
      %v2193 = vadd.f32 %v2080, %v2192
      %v2194 = vpop.f32.mrb[0].mxu0
      %2195 = vmatprep.mubr.bf16.mxu0 0
      %2196 = vmatmul.mubr.bf16.gmra.mrb[0].mxu0 %v2102
      %v2197 = vpop.f32.mrb[0].mxu0
      %v2198 = vadd.f32 %v2080, %v2197
      %v2199 = vpop.f32.mrb[0].mxu0
      %v2200 = vpop.f32.mrb[0].mxu0
      %v2201 = vadd.f32 %v2080, %v2200
      %v2202 = vpop.f32.mrb[0].mxu0
      %2203 = vmatprep.mubr.bf16.mxu0 0
      %2204 = vmatmul.mubr.bf16.gmra.mrb[0].mxu0 %v2105
      %v2205 = vpop.f32.mrb[0].mxu0
      %v2206 = vadd.f32 %v2080, %v2205
      %v2207 = vpop.f32.mrb[0].mxu0
      %v2208 = vpop.f32.mrb[0].mxu0
      %v2209 = vadd.f32 %v2080, %v2208
      %v2210 = vpop.f32.mrb[0].mxu0
      %2211 = vmatprep.mubr.bf16.mxu0 0
      %2212 = vmatmul.mubr.bf16.gmra.mrb[0].mxu0 %v2108
      %v2213 = vpop.f32.mrb[0].mxu0
      %v2214 = vadd.f32 %v2080, %v2213
      %v2215 = vpop.f32.mrb[0].mxu0
      %v2216 = vpop.f32.mrb[0].mxu0
      %v2217 = vadd.f32 %v2080, %v2216
      %v2218 = vpop.f32.mrb[0].mxu0
      %2219 = vmatprep.mubr.bf16.mxu0 0
      %2220 = vmatmul.mubr.bf16.gmra.mrb[0].mxu0 %v2111
      %v2221 = vpop.f32.mrb[0].mxu0
      %v2222 = vadd.f32 %v2080, %v2221
      %v2223 = vpop.f32.mrb[0].mxu0
      %v2224 = vpop.f32.mrb[0].mxu0
      %v2225 = vadd.f32 %v2080, %v2224
      %v2226 = vpop.f32.mrb[0].mxu0
      %2227 = vmatprep.mubr.bf16.mxu0 0
      %2228 = vmatmul.mubr.bf16.gmra.mrb[0].mxu0 %v2114
      %v2229 = vpop.f32.mrb[0].mxu0
      %v2230 = vadd.f32 %v2080, %v2229
      %v2231 = vpop.f32.mrb[0].mxu0
      %v2232 = vpop.f32.mrb[0].mxu0
      %v2233 = vadd.f32 %v2080, %v2232
      %v2234 = vpop.f32.mrb[0].mxu0
      %2235 = vmatprep.mubr.bf16.mxu0 0
      %2236 = vmatmul.mubr.bf16.gmra.mrb[0].mxu0 %v2117
      %v2237 = vpop.f32.mrb[0].mxu0
      %v2238 = vadd.f32 %v2080, %v2237
      %v2239 = vpop.f32.mrb[0].mxu0
      %v2240 = vpop.f32.mrb[0].mxu0
      %v2241 = vadd.f32 %v2080, %v2240
      %v2242 = vpop.f32.mrb[0].mxu0
      %2243 = vmatprep.mubr.bf16.mxu0 0
      %2244 = vmatmul.mubr.bf16.gmra.mrb[0].mxu0 %v2120
      %v2245 = vpop.f32.mrb[0].mxu0
      %v2246 = vadd.f32 %v2080, %v2245
      %v2247 = vpop.f32.mrb[0].mxu0
      %v2248 = vpop.f32.mrb[0].mxu0
      %v2249 = vadd.f32 %v2080, %v2248
      %v2250 = vpop.f32.mrb[0].mxu0
      %2251 = vmatprep.mubr.bf16.mxu0 0
      %2252 = vmatmul.mubr.bf16.gmra.mrb[0].mxu0 %v2123
      %v2253 = vpop.f32.mrb[0].mxu0
      %v2254 = vadd.f32 %v2080, %v2253
      %v2255 = vpop.f32.mrb[0].mxu0
      %v2256 = vpop.f32.mrb[0].mxu0
      %v2257 = vadd.f32 %v2080, %v2256
      %v2258 = vpop.f32.mrb[0].mxu0
      %2259 = vmatprep.mubr.bf16.mxu0 0
      %2260 = vmatmul.mubr.bf16.gmra.mrb[0].mxu0 %v2126
      %v2261 = vpop.f32.mrb[0].mxu0
      %v2262 = vadd.f32 %v2080, %v2261
      %v2263 = vpop.f32.mrb[0].mxu0
      %v2264 = vpop.f32.mrb[0].mxu0
      %v2265 = vadd.f32 %v2080, %v2264
      %v2266 = vpop.f32.mrb[0].mxu0
      %2267 = vmatprep.mubr.bf16.mxu0 0
      %2268 = vmatmul.mubr.bf16.gmra.mrb[0].mxu0 %v2129
      %v2269 = vpop.f32.mrb[0].mxu0
      %v2270 = vadd.f32 %v2080, %v2269
      %v2271 = vpop.f32.mrb[0].mxu0
      %v2272 = vpop.f32.mrb[0].mxu0
      %v2273 = vadd.f32 %v2080, %v2272
      %v2274 = vpop.f32.mrb[0].mxu0
      %2275 = vmatprep.mubr.bf16.mxu0 0
      %2276 = vmatmul.mubr.bf16.gmra.mrb[0].mxu0 %v2132
      %v2277 = vpop.f32.mrb[0].mxu0
      %v2278 = vadd.f32 %v2080, %v2277
      %v2279 = vpop.f32.mrb[0].mxu0
      %v2280 = vpop.f32.mrb[0].mxu0
      %v2281 = vadd.f32 %v2080, %v2280
      %v2282 = vpop.f32.mrb[0].mxu0
      %2283 = vmatprep.mubr.bf16.mxu0 0
      %2284 = vmatmul.mubr.bf16.gmra.mrb[0].mxu0 %v2135
      %v2285 = vpop.f32.mrb[0].mxu0
      %v2286 = vadd.f32 %v2080, %v2285
      %v2287 = vpop.f32.mrb[0].mxu0
      %v2288 = vpop.f32.mrb[0].mxu0
      %v2289 = vadd.f32 %v2080, %v2288
      %v2290 = vpop.f32.mrb[0].mxu0
      %2291 = vmatprep.mubr.bf16.mxu0 0
      %2292 = vmatmul.mubr.bf16.gmra.mrb[0].mxu0 %v2138
      %v2293 = vpop.f32.mrb[0].mxu0
      %v2294 = vadd.f32 %v2080, %v2293
      %v2295 = vpop.f32.mrb[0].mxu0
      %v2296 = vpop.f32.mrb[0].mxu0
      %v2297 = vadd.f32 %v2080, %v2296
      %v2298 = vpop.f32.mrb[0].mxu0
      %2299 = vmatprep.mubr.bf16.mxu0 0
      %2300 = vmatmul.mubr.bf16.gmra.mrb[0].mxu0 %v2141
      %v2301 = vpop.f32.mrb[0].mxu0
      %v2302 = vadd.f32 %v2080, %v2301
      %v2303 = vpop.f32.mrb[0].mxu0
      %v2304 = vpop.f32.mrb[0].mxu0
      %v2305 = vadd.f32 %v2080, %v2304
      %v2306 = vpop.f32.mrb[0].mxu0
      %2307 = vmatprep.mubr.bf16.mxu0 0
      %2308 = vmatmul.mubr.bf16.gmra.mrb[0].mxu0 %v2144
      %v2309 = vpop.f32.mrb[0].mxu0
      %v2310 = vadd.f32 %v2080, %v2309
      %v2311 = vpop.f32.mrb[0].mxu0
      %v2312 = vpop.f32.mrb[0].mxu0
      %v2313 = vadd.f32 %v2080, %v2312
      %v2314 = vpop.f32.mrb[0].mxu0
      %2315 = vmatprep.mubr.bf16.mxu0 0
      %2316 = vmatmul.mubr.bf16.gmra.mrb[0].mxu0 %v2147
      %v2317 = vpop.f32.mrb[0].mxu0
      %v2318 = vadd.f32 %v2080, %v2317
      %v2319 = vpop.f32.mrb[0].mxu0
      %v2320 = vpop.f32.mrb[0].mxu0
      %v2321 = vadd.f32 %v2080, %v2320
      %v2322 = vpop.f32.mrb[0].mxu0
      %2323 = vmatprep.mubr.bf16.mxu0 0
      %2324 = vmatmul.mubr.bf16.gmra.mrb[0].mxu0 %v2150
      %v2325 = vpop.f32.mrb[0].mxu0
      %v2326 = vadd.f32 %v2080, %v2325
      %v2327 = vpop.f32.mrb[0].mxu0
      %v2328 = vpop.f32.mrb[0].mxu0
      %v2329 = vadd.f32 %v2080, %v2328
      %v2330 = vpop.f32.mrb[0].mxu0
      %2331 = vdwg.mxu0
      %v2332 = vmax.f32 %v2190, 0.0
      %v2333 = vmax.f32 %v2193, 0.0
      %v2334 = vmax.f32 %v2198, 0.0
      %v2335 = vmax.f32 %v2201, 0.0
      %v2336 = vmax.f32 %v2206, 0.0
      %v2337 = vmax.f32 %v2209, 0.0
      %v2338 = vmax.f32 %v2214, 0.0
      %v2339 = vmax.f32 %v2217, 0.0
      %v2340 = vmax.f32 %v2222, 0.0
      %v2341 = vmax.f32 %v2225, 0.0
      %v2342 = vmax.f32 %v2230, 0.0
      %v2343 = vmax.f32 %v2233, 0.0
      %v2344 = vmax.f32 %v2238, 0.0
      %v2345 = vmax.f32 %v2241, 0.0
      %v2346 = vmax.f32 %v2246, 0.0
      %v2347 = vmax.f32 %v2249, 0.0
      %v2348 = vmax.f32 %v2254, 0.0
      %v2349 = vmax.f32 %v2257, 0.0
      %v2350 = vmax.f32 %v2262, 0.0
      %v2351 = vmax.f32 %v2265, 0.0
      %v2352 = vmax.f32 %v2270, 0.0
      %v2353 = vmax.f32 %v2273, 0.0
      %v2354 = vmax.f32 %v2278, 0.0
      %v2355 = vmax.f32 %v2281, 0.0
      %v2356 = vmax.f32 %v2286, 0.0
      %v2357 = vmax.f32 %v2289, 0.0
      %v2358 = vmax.f32 %v2294, 0.0
      %v2359 = vmax.f32 %v2297, 0.0
      %v2360 = vmax.f32 %v2302, 0.0
      %v2361 = vmax.f32 %v2305, 0.0
      %v2362 = vmax.f32 %v2310, 0.0
      %v2363 = vmax.f32 %v2313, 0.0
      %v2364 = vmax.f32 %v2318, 0.0
      %v2365 = vmax.f32 %v2321, 0.0
      %v2366 = vmax.f32 %v2326, 0.0
      %v2367 = vmax.f32 %v2329, 0.0
      %v2368 = vld [vmem:[#allocation2] sm:$0x1]
      %v2369 = vld [vmem:[%s3] sm:$0x7]
      %v2371 = vlaneseq
      %v2372 = vshrl.u32 %v2371, 7
      %v2373 = vsub.s32 0, %v2372
      %v2374 = vrot.slane %v2369, %v2373
      %v2375 = vlaneseq
      %v2376 = vshrl.u32 %v2375, 7
      %v2377 = vsub.s32 1, %v2376
      %v2378 = vrot.slane %v2369, %v2377
      %v2379 = vlaneseq
      %v2380 = vshrl.u32 %v2379, 7
      %v2381 = vsub.s32 2, %v2380
      %v2382 = vrot.slane %v2369, %v2381
      %v2385 = vsel %vm2015, %v2382, 0
      %2387 = vmatprep.subr.mxu0 0.0
      %2388 = vmatpush1.msra.mxu0 %v2332
      %2389 = vmatprep.subr.mxu0 0.0
      %2390 = vmatpush1.msra.mxu0 %v2333
      %2391 = vmatprep.subr.mxu0 0.0
      %2392 = vmatpush1.msra.mxu0 %v2334
      %2393 = vmatprep.subr.mxu0 0.0
      %2394 = vmatpush1.msra.mxu0 %v2335
      %2395 = vmatprep.subr.mxu0 0.0
      %2396 = vmatpush1.msra.mxu0 %v2336
      %2397 = vmatprep.subr.mxu0 0.0
      %2398 = vmatpush1.msra.mxu0 %v2337
      %2399 = vmatprep.subr.mxu0 0.0
      %2400 = vmatpush1.msra.mxu0 %v2338
      %2401 = vmatprep.subr.mxu0 0.0
      %2402 = vmatpush1.msra.mxu0 %v2339
      %2403 = vmatprep.subr.mxu0 0.0
      %2404 = vmatpush1.msra.mxu0 %v2340
      %2405 = vmatprep.subr.mxu0 0.0
      %2406 = vmatpush1.msra.mxu0 %v2341
      %2407 = vmatprep.subr.mxu0 0.0
      %2408 = vmatpush1.msra.mxu0 %v2342
      %2409 = vmatprep.subr.mxu0 0.0
      %2410 = vmatpush1.msra.mxu0 %v2343
      %2411 = vmatprep.subr.mxu0 0.0
      %2412 = vmatpush1.msra.mxu0 %v2344
      %2413 = vmatprep.subr.mxu0 0.0
      %2414 = vmatpush1.msra.mxu0 %v2345
      %2415 = vmatprep.subr.mxu0 0.0
      %2416 = vmatpush1.msra.mxu0 %v2346
      %2417 = vmatprep.subr.mxu0 0.0
      %2418 = vmatpush1.msra.mxu0 %v2347
      %2419 = vmatprep.subr.mxu0 0.0
      %2420 = vmatpush1.msra.mxu0 %v2348
      %2421 = vmatprep.subr.mxu0 0.0
      %2422 = vmatpush1.msra.mxu0 %v2349
      %2423 = vmatprep.subr.mxu0 0.0
      %2424 = vmatpush1.msra.mxu0 %v2350
      %2425 = vmatprep.subr.mxu0 0.0
      %2426 = vmatpush1.msra.mxu0 %v2351
      %2427 = vmatprep.subr.mxu0 0.0
      %2428 = vmatpush1.msra.mxu0 %v2352
      %2429 = vmatprep.subr.mxu0 0.0
      %2430 = vmatpush1.msra.mxu0 %v2353
      %2431 = vmatprep.subr.mxu0 0.0
      %2432 = vmatpush1.msra.mxu0 %v2354
      %2433 = vmatprep.subr.mxu0 0.0
      %2434 = vmatpush1.msra.mxu0 %v2355
      %2435 = vmatprep.subr.mxu0 0.0
      %2436 = vmatpush1.msra.mxu0 %v2356
      %2437 = vmatprep.subr.mxu0 0.0
      %2438 = vmatpush1.msra.mxu0 %v2357
      %2439 = vmatprep.subr.mxu0 0.0
      %2440 = vmatpush1.msra.mxu0 %v2358
      %2441 = vmatprep.subr.mxu0 0.0
      %2442 = vmatpush1.msra.mxu0 %v2359
      %2443 = vmatprep.subr.mxu0 0.0
      %2444 = vmatpush1.msra.mxu0 %v2360
      %2445 = vmatprep.subr.mxu0 0.0
      %2446 = vmatpush1.msra.mxu0 %v2361
      %2447 = vmatprep.subr.mxu0 0.0
      %2448 = vmatpush1.msra.mxu0 %v2362
      %2449 = vmatprep.subr.mxu0 0.0
      %2450 = vmatpush1.msra.mxu0 %v2363
      %2451 = vmatprep.mubr.f32.mxu0 %v2378
      %2452 = vmatmul.mubr.f32.gmra.mrb[0].mxu0 %v2374
      %v2453 = vpop.f32.mrb[0].mxu0
      %v2454 = vadd.f32 0.0, %v2453
      %v2455 = vpop.f32.mrb[0].mxu0
      %2456 = vdwg.mxu0
      %2457 = vmatprep.subr.mxu0 0.0
      %2458 = vmatpush1.msra.mxu0 %v2364
      %2459 = vmatprep.subr.mxu0 0.0
      %2460 = vmatpush1.msra.mxu0 %v2365
      %2461 = vmatprep.subr.mxu0 0.0
      %2462 = vmatpush1.msra.mxu0 %v2366
      %2463 = vmatprep.subr.mxu0 0.0
      %2464 = vmatpush1.msra.mxu0 %v2367
      %2465 = vmatprep.subr.mxu0 0.0
      %2466 = vmatpush1.msra.mxu0 0.0
      %2467 = vmatprep.subr.mxu0 0.0
      %2468 = vmatpush1.msra.mxu0 0.0
      %2469 = vmatprep.subr.mxu0 0.0
      %2470 = vmatpush1.msra.mxu0 0.0
      %2471 = vmatprep.subr.mxu0 0.0
      %2472 = vmatpush1.msra.mxu0 0.0
      %2473 = vmatprep.subr.mxu0 0.0
      %2474 = vmatpush1.msra.mxu0 0.0
      %2475 = vmatprep.subr.mxu0 0.0
      %2476 = vmatpush1.msra.mxu0 0.0
      %2477 = vmatprep.subr.mxu0 0.0
      %2478 = vmatpush1.msra.mxu0 0.0
      %2479 = vmatprep.subr.mxu0 0.0
      %2480 = vmatpush1.msra.mxu0 0.0
      %2481 = vmatprep.subr.mxu0 0.0
      %2482 = vmatpush1.msra.mxu0 0.0
      %2483 = vmatprep.subr.mxu0 0.0
      %2484 = vmatpush1.msra.mxu0 0.0
      %2485 = vmatprep.subr.mxu0 0.0
      %2486 = vmatpush1.msra.mxu0 0.0
      %2487 = vmatprep.subr.mxu0 0.0
      %2488 = vmatpush1.msra.mxu0 0.0
      %2489 = vmatprep.subr.mxu0 0.0
      %2490 = vmatpush1.msra.mxu0 0.0
      %2491 = vmatprep.subr.mxu0 0.0
      %2492 = vmatpush1.msra.mxu0 0.0
      %2493 = vmatprep.subr.mxu0 0.0
      %2494 = vmatpush1.msra.mxu0 0.0
      %2495 = vmatprep.subr.mxu0 0.0
      %2496 = vmatpush1.msra.mxu0 0.0
      %2497 = vmatprep.subr.mxu0 0.0
      %2498 = vmatpush1.msra.mxu0 0.0
      %2499 = vmatprep.subr.mxu0 0.0
      %2500 = vmatpush1.msra.mxu0 0.0
      %2501 = vmatprep.subr.mxu0 0.0
      %2502 = vmatpush1.msra.mxu0 0.0
      %2503 = vmatprep.subr.mxu0 0.0
      %2504 = vmatpush1.msra.mxu0 0.0
      %2505 = vmatprep.subr.mxu0 0.0
      %2506 = vmatpush1.msra.mxu0 0.0
      %2507 = vmatprep.subr.mxu0 0.0
      %2508 = vmatpush1.msra.mxu0 0.0
      %2509 = vmatprep.subr.mxu0 0.0
      %2510 = vmatpush1.msra.mxu0 0.0
      %2511 = vmatprep.subr.mxu0 0.0
      %2512 = vmatpush1.msra.mxu0 0.0
      %2513 = vmatprep.subr.mxu0 0.0
      %2514 = vmatpush1.msra.mxu0 0.0
      %2515 = vmatprep.subr.mxu0 0.0
      %2516 = vmatpush1.msra.mxu0 0.0
      %2517 = vmatprep.subr.mxu0 0.0
      %2518 = vmatpush1.msra.mxu0 0.0
      %2519 = vmatprep.subr.mxu0 0.0
      %2520 = vmatpush1.msra.mxu0 0.0
      %2521 = vmatprep.mubr.f32.mxu0 0.0
      %2522 = vmatmul.mubr.f32.gmra.mrb[0].mxu0 %v2385
      %v2523 = vpop.f32.mrb[0].mxu0
      %v2524 = vadd.f32 %v2454, %v2523
      %v2525 = vpop.f32.mrb[0].mxu0
      %2526 = vdwg.mxu0
      %v2527 = vadd.f32 %v2368, %v2524
      %2528 = vst [vmem:[#allocation2] sm:$0x1] %v2527
      // Predicated region
      $region49: #{classification_forward.1} parent=43 // pred_check
        %p2529 = pneg %p277
      $region50: #{classification_forward.1} parent=43 // pred_check_branch
        %2531 = sbr.rel (%p2529) target = $region52
      $region51: #{classification_forward.1} parent=43 // pred_region
        %v2532 = vld [vmem:[#allocation2] sm:$0x1]
        %v2533 = vld [vmem:[%s4] sm:$0xff]
        %v2534 = vld [vmem:[%s4 + $0x8] sm:$0xff]
        %v2535 = vld [vmem:[%s4 + $0x10] sm:$0xff]
        %v2536 = vld [vmem:[%s4 + $0x18] sm:$0xff]
        %v2537 = vld [vmem:[%s4 + $0x20] sm:$0xff]
        %v2538 = vld [vmem:[%s4 + $0x28] sm:$0xff]
        %v2539 = vld [vmem:[%s4 + $0x30] sm:$0xff]
        %v2540 = vld [vmem:[%s4 + $0x38] sm:$0xff]
        %v2541 = vld [vmem:[%s4 + $0x40] sm:$0xff]
        %v2542 = vld [vmem:[%s4 + $0x48] sm:$0xff]
        %v2543 = vld [vmem:[%s4 + $0x50] sm:$0xff]
        %v2544 = vld [vmem:[%s4 + $0x58] sm:$0xff]
        %v2545 = vld [vmem:[%s4 + $0x60] sm:$0xff]
        %v2546 = vld [vmem:[%s4 + $0x68] sm:$0xff]
        %v2547 = vld [vmem:[%s4 + $0x70] sm:$0xff]
        %v2548 = vld [vmem:[%s4 + $0x78] sm:$0xff]
        %v2549 = vld [vmem:[#allocation3] sm:$0x1]
        %2550 = vmatprep.subr.mxu0 0.0
        %2551 = vmatpush1.msra.mxu0 %v2533
        %2552 = vmatprep.subr.mxu0 0.0
        %2553 = vmatpush1.msra.mxu0 %v2534
        %2554 = vmatprep.subr.mxu0 0.0
        %2555 = vmatpush1.msra.mxu0 %v2535
        %2556 = vmatprep.subr.mxu0 0.0
        %2557 = vmatpush1.msra.mxu0 %v2536
        %2558 = vmatprep.subr.mxu0 0.0
        %2559 = vmatpush1.msra.mxu0 %v2537
        %2560 = vmatprep.subr.mxu0 0.0
        %2561 = vmatpush1.msra.mxu0 %v2538
        %2562 = vmatprep.subr.mxu0 0.0
        %2563 = vmatpush1.msra.mxu0 %v2539
        %2564 = vmatprep.subr.mxu0 0.0
        %2565 = vmatpush1.msra.mxu0 %v2540
        %2566 = vmatprep.subr.mxu0 0.0
        %2567 = vmatpush1.msra.mxu0 %v2541
        %2568 = vmatprep.subr.mxu0 0.0
        %2569 = vmatpush1.msra.mxu0 %v2542
        %2570 = vmatprep.subr.mxu0 0.0
        %2571 = vmatpush1.msra.mxu0 %v2543
        %2572 = vmatprep.subr.mxu0 0.0
        %2573 = vmatpush1.msra.mxu0 %v2544
        %2574 = vmatprep.subr.mxu0 0.0
        %2575 = vmatpush1.msra.mxu0 %v2545
        %2576 = vmatprep.subr.mxu0 0.0
        %2577 = vmatpush1.msra.mxu0 %v2546
        %2578 = vmatprep.subr.mxu0 0.0
        %2579 = vmatpush1.msra.mxu0 %v2547
        %2580 = vmatprep.subr.mxu0 0.0
        %2581 = vmatpush1.msra.mxu0 %v2548
        %2582 = vmatprep.subr.mxu0 0.0
        %2583 = vmatpush1.msra.mxu0 0.0
        %2584 = vmatprep.subr.mxu0 0.0
        %2585 = vmatpush1.msra.mxu0 0.0
        %2586 = vmatprep.subr.mxu0 0.0
        %2587 = vmatpush1.msra.mxu0 0.0
        %2588 = vmatprep.subr.mxu0 0.0
        %2589 = vmatpush1.msra.mxu0 0.0
        %2590 = vmatprep.subr.mxu0 0.0
        %2591 = vmatpush1.msra.mxu0 0.0
        %2592 = vmatprep.subr.mxu0 0.0
        %2593 = vmatpush1.msra.mxu0 0.0
        %2594 = vmatprep.subr.mxu0 0.0
        %2595 = vmatpush1.msra.mxu0 0.0
        %2596 = vmatprep.subr.mxu0 0.0
        %2597 = vmatpush1.msra.mxu0 0.0
        %2598 = vmatprep.subr.mxu0 0.0
        %2599 = vmatpush1.msra.mxu0 0.0
        %2600 = vmatprep.subr.mxu0 0.0
        %2601 = vmatpush1.msra.mxu0 0.0
        %2602 = vmatprep.subr.mxu0 0.0
        %2603 = vmatpush1.msra.mxu0 0.0
        %2604 = vmatprep.subr.mxu0 0.0
        %2605 = vmatpush1.msra.mxu0 0.0
        %2606 = vmatprep.subr.mxu0 0.0
        %2607 = vmatpush1.msra.mxu0 0.0
        %2608 = vmatprep.subr.mxu0 0.0
        %2609 = vmatpush1.msra.mxu0 0.0
        %2610 = vmatprep.subr.mxu0 0.0
        %2611 = vmatpush1.msra.mxu0 0.0
        %2612 = vmatprep.subr.mxu0 0.0
        %2613 = vmatpush1.msra.mxu0 0.0
        %2614 = vmatprep.mubr.f32.mxu0 0.0
        %2615 = vmatmul.mubr.f32.gmra.mrb[0].mxu0 %v2532
        %v2616 = vpop.f32.mrb[0].mxu0
        %v2617 = vadd.f32 %v2549, %v2616
        %v2618 = vpop.f32.mrb[0].mxu0
        %2619 = vdwg.mxu0
        %vm2620 = vcmask 0
        %2621 = vst.msk [vmem:[%s275] sm:$0x1] %vm2620, %v2617
      $region52: #{classification_forward.1} parent=43 // pred_fallthru
        _
      %p2622 = scmp.lt.s32.totalorder %s23, 1
      %s2623 = scalar_select %p2622, %s23, 1
      %s2624 = scalar_lea.vmem %s6, %s2623
      // Predicated region
      $region53: #{classification_forward.1} parent=43 // pred_check
        %p2625 = pneg %p182
      $region54: #{classification_forward.1} parent=43 // pred_check_branch
        %2627 = sbr.rel (%p2625) target = $region56
      $region55: #{classification_forward.1} parent=43 // pred_region
        _
      $region56: #{classification_forward.1} parent=43 // pred_fallthru
        _
    $region44: #{classification_forward.1} parent=5 // pred_fallthru
      _
    %p2628 = scmp.le.s32.totalorder 2, %s14
    // Predicated region
    $region57: #{classification_forward.1} parent=5 // pred_check
      %p2629 = pneg %p2628
    $region58: #{classification_forward.1} parent=5 // pred_check_branch
      %2631 = sbr.rel (%p2629) target = $region60
    $region59: #{classification_forward.1} parent=5 // pred_region
      %s2632 = ssub.s32 %s14, 2
      // Predicated region
      $region61: #{classification_forward.1} parent=59 // pred_check
        %p2633 = pneg %p188
      $region62: #{classification_forward.1} parent=59 // pred_check_branch
        %2635 = sbr.rel (%p2633) target = $region64
      $region63: #{classification_forward.1} parent=59 // pred_region
        %p2636 = scmp.lt.s32.totalorder %s25, 1
        %s2637 = scalar_select %p2636, %s25, 1
        %s2638 = scalar_lea.vmem %s6, %s2637
      $region64: #{classification_forward.1} parent=59 // pred_fallthru
        _
    $region60: #{classification_forward.1} parent=5 // pred_fallthru
      _
  $region6: #{classification_forward.1} parent=0 // loop_footer
    %s18 = sadd.s32 1, %s14
  $region7: #{classification_forward.1} parent=0 // loop_footer_branch
    %13 = sbr.rel target = $region3
  $region8: #{classification_forward.1} parent=0 // loop_exit
    _

</llo_original>
